<compile_context>
chip_gen: v6e
topology: v6e:2x2x1
jax: 0.10.0
libtpu: 0.0.40
codegen_flags: <defaults>
</compile_context>

<pallas_src>
import numpy as np

import jax
import jax.numpy as jnp
from jax.experimental import pallas as pl
from jax.experimental.pallas import tpu as pltpu

N_SCALES = 4     # MAGELoss(4, ...)
ALPHA = 0.5      # SSIMAELoss(alpha=0.5)


# ---------------------------------------------------------------------------
# Host-side constant operators: 5x5 Gaussian blur ('same' zero pad) fused with
# the 2x downsample (F.interpolate(scale_factor=0.5, bilinear,
# align_corners=False) == exact 2x2 average pooling).
# ---------------------------------------------------------------------------
def _blur_matrix(n):
    """Banded (n, n) matrix applying the 1-D [1,4,6,4,1]/16 'same' zero-pad conv."""
    g = np.array([1.0, 4.0, 6.0, 4.0, 1.0], np.float32) / 16.0
    m = np.zeros((n, n), np.float32)
    for i in range(n):
        for k in range(5):
            j = i + k - 2
            if 0 <= j < n:
                m[i, j] = g[k]
    return m


def _pool_matrix(n):
    """(n//2, n) matrix averaging adjacent pairs (0.5, 0.5)."""
    a = np.zeros((n // 2, n), np.float32)
    idx = np.arange(n // 2)
    a[idx, 2 * idx] = 0.5
    a[idx, 2 * idx + 1] = 0.5
    return a


def _scale_operators(H, W):
    """Per-scale (M_row, M_col) such that downsample(blur(x)) == M_row @ x @ M_col.

    Stored in bfloat16: every entry is a small multiple of 1/32, exactly
    representable in bf16, so the narrow storage is lossless and halves the
    operators' VMEM footprint and HBM DMA traffic."""
    ops = []
    hs, ws = H, W
    for _ in range(N_SCALES - 1):
        m_row = _pool_matrix(hs) @ _blur_matrix(hs)        # (hs/2, hs)
        m_col = _blur_matrix(ws) @ _pool_matrix(ws).T      # (ws, ws/2)
        ops.append((jnp.asarray(m_row, dtype=jnp.bfloat16),
                    jnp.asarray(m_col, dtype=jnp.bfloat16)))
        hs //= 2
        ws //= 2
    return ops


# ---------------------------------------------------------------------------
# Kernel helpers (trace-time; operate on VMEM-resident values)
# ---------------------------------------------------------------------------
def _scharr_mag(x):
    """Valid 3x3 Scharr cross-correlation -> gradient magnitude (separable form)."""
    hs, ws = x.shape
    ho, wo = hs - 2, ws - 2
    # scharr_x = [3,10,3]^T (vertical smooth) x [1,0,-1] (horizontal diff)
    hdiff = x[:, 0:wo] - x[:, 2:wo + 2]                                    # (hs, wo)
    gx = 3.0 * hdiff[0:ho, :] + 10.0 * hdiff[1:ho + 1, :] + 3.0 * hdiff[2:ho + 2, :]
    # scharr_y = [1,0,-1]^T (vertical diff) x [3,10,3] (horizontal smooth)
    hsm = 3.0 * x[:, 0:wo] + 10.0 * x[:, 1:wo + 1] + 3.0 * x[:, 2:wo + 2]  # (hs, wo)
    gy = hsm[0:ho, :] - hsm[2:ho + 2, :]
    return jnp.sqrt(gx * gx + gy * gy)


def _grad_loss_packed(z, h):
    """Per-image mean |grad-mag_p - grad-mag_t| for a row-stacked pair.

    z = [pred ; targ], shape (2h, w).  The Scharr magnitude is computed once
    on the packed array; the two output rows that straddle the seam lie
    outside both halves' valid interiors, so the result is exact without a
    gap row."""
    mag = _scharr_mag(z)                       # (2h-2, w-2)
    ho = h - 2
    diff = jnp.abs(mag[0:ho, :] - mag[h:h + ho, :])
    return jnp.mean(diff, keepdims=True)       # (1, 1)


def _blur_downsample_packed(z, h, m_row, m_col):
    """Gaussian blur (padding=2) + exact 2x downsample for a row-stacked pair,
    as MXU matmuls with both images batched through each matmul.

    Default (bf16-operand) MXU precision is used intentionally; the operators
    are exactly representable in bf16 and the image cast only perturbs a loss
    value.  z: (2h, w) -> (h, w/2), still row-stacked [pred ; targ]."""
    w = z.shape[1]
    # Column operator acts per-row -> both images in ONE matmul, no re-layout.
    zc = jnp.dot(z.astype(jnp.bfloat16), m_col,
                 preferred_element_type=jnp.float32)               # (2h, w/2)
    # Row operator: pack the two halves side-by-side along lanes so a single
    # matmul (double free dimension) handles both images.
    yc = jnp.concatenate([zc[:h, :], zc[h:, :]], axis=1)           # (h, w)
    y = jnp.dot(m_row, yc.astype(jnp.bfloat16),
                preferred_element_type=jnp.float32)                # (h/2, w)
    wh = w // 2
    return jnp.concatenate([y[:, :wh], y[:, wh:]], axis=0)         # (h, w/2)


# ---------------------------------------------------------------------------
# Kernel: one image pair per grid step -> per-image partial loss
# ---------------------------------------------------------------------------
def _ssimae_kernel(shift_p_ref, shift_t_ref,            # scalar-prefetch (SMEM, f32[B])
                   pred_ref, targ_ref,                  # (H, W) VMEM tiles
                   mr0_ref, mc0_ref, mr1_ref, mc1_ref, mr2_ref, mc2_ref,
                   out_ref):                            # (1, 1) per-image loss
    b = pl.program_id(0)

    x = pred_ref[...]                  # (H, W)
    t = targ_ref[...]
    xd = x - shift_p_ref[b]            # per-image median shift (SMEM scalar read)
    td = t - shift_t_ref[b]

    scale_p = jnp.mean(jnp.abs(xd), keepdims=True)      # (1, 1)
    scale_t = jnp.mean(jnp.abs(td), keepdims=True)
    # Exact scalar reciprocal (one divide on a (1,1) value) + broadcast
    # multiply -- matches the reference's exact divide.  NOTE: no eps guard on
    # purpose; a constant image yields NaN in the PyTorch module as well.
    p_ssi = xd * (1.0 / scale_p)
    t_ssi = td * (1.0 / scale_t)

    # scale/shift-invariant MAE term (per-image mean over HxW, divided by 2)
    mae = 0.5 * jnp.mean(jnp.abs(p_ssi - t_ssi), keepdims=True)      # (1, 1)

    # multi-scale gradient (MAGE) term on the row-stacked [pred ; targ] pair
    h = x.shape[0]
    z = jnp.concatenate([p_ssi, t_ssi], axis=0)                      # (2H, W)
    total = _grad_loss_packed(z, h)
    for mr_ref, mc_ref in ((mr0_ref, mc0_ref), (mr1_ref, mc1_ref), (mr2_ref, mc2_ref)):
        z = _blur_downsample_packed(z, h, mr_ref[...], mc_ref[...])
        h //= 2
        total = total + _grad_loss_packed(z, h)
    gm = total * (1.0 / N_SCALES)

    out_ref[...] = mae + ALPHA * gm


# ---------------------------------------------------------------------------
# Wrapper
# ---------------------------------------------------------------------------
def _vmem_capacity_bytes():
    try:
        info = pltpu.get_tpu_info()
        cap = getattr(info, "vmem_capacity_bytes", None)
        if cap:
            return int(cap)
    except Exception:
        pass
    return 128 * 1024 * 1024      # v5e / v6e default assumption


def _const_op_spec(shape, single_buffer):
    idx = lambda b, sp, st: (0, 0)
    # Constant-index operands never benefit from a second pipeline buffer;
    # request single-buffering when the operators are big enough to matter.
    if single_buffer and hasattr(pl, "Buffered"):
        try:
            return pl.BlockSpec(shape, idx, pipeline_mode=pl.Buffered(1))
        except TypeError:
            pass
    return pl.BlockSpec(shape, idx)


def ssimae_loss(prediction, target):
    prediction = prediction.astype(jnp.float32)
    target = target.astype(jnp.float32)
    B, H, W = prediction.shape
    assert H % (1 << (N_SCALES - 1)) == 0 and W % (1 << (N_SCALES - 1)) == 0
    assert (H >> (N_SCALES - 1)) >= 3 and (W >> (N_SCALES - 1)) >= 3

    # torch.median: for an even element count it returns the LOWER middle value.
    # TODO(synk): median (sort-based selection) has no clean Pallas TPU
    # lowering; computed in plain JAX.  For >=0.25 Mpixel frames replace the
    # full sort with a bucketed/partition selection -- it dominates end-to-end
    # latency there.
    n = H * W
    k = (n - 1) // 2
    shift_p = jnp.sort(prediction.reshape(B, n), axis=1)[:, k]    # (B,)
    shift_t = jnp.sort(target.reshape(B, n), axis=1)[:, k]        # (B,)

    op_args = [m for pair in _scale_operators(H, W) for m in pair]
    op_bytes = sum(int(np.prod(m.shape)) * 2 for m in op_args)    # bf16 storage
    single_buffer_ops = op_bytes > (1 << 20)                      # only worth it when large

    def img_block():
        return pl.BlockSpec((None, H, W), lambda b, sp, st: (b, 0, 0))

    op_specs = [_const_op_spec(tuple(int(d) for d in m.shape), single_buffer_ops)
                for m in op_args]

    # VMEM budget: double-buffered pred/targ input blocks + ~24 live f32
    # image planes (packed-pair intermediates) + operator matrices (x2 in case
    # single-buffering is unavailable) + slack; clamped below physical
    # capacity with headroom (v7x: cap-8 MiB; 128 MiB chips: ~100 MiB).
    img_plane = H * W * 4
    est = (2 * 2 + 24) * img_plane + 2 * op_bytes + (2 << 20)
    cap = _vmem_capacity_bytes()
    cap_allow = (100 << 20) if cap >= (100 << 20) else max(cap - (8 << 20), 32 << 20)
    vmem_limit = int(min(cap_allow, max(32 << 20, est)))
    # TODO(synk): frames whose estimate exceeds cap_allow need the W-tiled
    # (4-pixel halo) path; the trigger fires ~2x earlier on v7x (64 MiB/TC).

    partial = pl.pallas_call(
        _ssimae_kernel,
        out_shape=jax.ShapeDtypeStruct((B, 1, 1), jnp.float32),
        grid_spec=pltpu.PrefetchScalarGridSpec(
            num_scalar_prefetch=2,
            grid=(B,),
            in_specs=[img_block(), img_block()] + op_specs,
            out_specs=pl.BlockSpec((None, 1, 1), lambda b, sp, st: (b, 0, 0)),
        ),
        # TODO(synk): on v7x use pltpu.CORE_PARALLEL (or pl.core_map over a
        # 2-core mesh) on the batch axis if "parallel" does not shard across
        # both TensorCores.
        compiler_params=pltpu.CompilerParams(
            dimension_semantics=("parallel",),
            vmem_limit_bytes=vmem_limit),
    )(shift_p, shift_t, prediction, target, *op_args)

    return jnp.mean(partial)


if __name__ == "__main__":
    key = jax.random.PRNGKey(0)
    kp, kt = jax.random.split(key)
    B, H, W = 2, 32, 32     # H, W must survive 3 halvings with >=3 pixels left for the 3x3 conv
    prediction = jax.random.normal(kp, (B, H, W), dtype=jnp.float32) + 1.5
    target = jax.random.normal(kt, (B, H, W), dtype=jnp.float32) * 0.8 + 1.0

    loss = jax.jit(ssimae_loss)(prediction, target)
    loss = jax.block_until_ready(loss)
    assert jnp.isfinite(loss), loss
    print("KERNEL_OK")
</pallas_src>

<mosaic_0001>
module attributes {stable_mosaic.version = 11 : i64} {
  func.func @_ssimae_kernel(%arg0: i32, %arg1: memref<2xf32, #tpu.memory_space<smem>>, %arg2: memref<2xf32, #tpu.memory_space<smem>>, %arg3: memref<1x32x32xf32, #tpu.memory_space<vmem>>, %arg4: memref<1x32x32xf32, #tpu.memory_space<vmem>>, %arg5: memref<16x32xbf16, #tpu.memory_space<vmem>>, %arg6: memref<32x16xbf16, #tpu.memory_space<vmem>>, %arg7: memref<8x16xbf16, #tpu.memory_space<vmem>>, %arg8: memref<16x8xbf16, #tpu.memory_space<vmem>>, %arg9: memref<4x8xbf16, #tpu.memory_space<vmem>>, %arg10: memref<8x4xbf16, #tpu.memory_space<vmem>>, %arg11: memref<1x1x1xf32, #tpu.memory_space<vmem>>) attributes {dimension_semantics = [#tpu.dimension_semantics<parallel>], iteration_bounds = array<i64: 2>, scalar_prefetch = 2 : i64, scratch_operands = 0 : i64, tpu.core_type = #tpu.core_type<tc>, window_params = [{transform_indices = @transform_0, window_bounds = array<i64: 1, 32, 32>}, {transform_indices = @transform_1, window_bounds = array<i64: 1, 32, 32>}, {pipeline_mode = #tpu.pipeline_mode<synchronous>, transform_indices = @transform_2, window_bounds = array<i64: 16, 32>}, {pipeline_mode = #tpu.pipeline_mode<synchronous>, transform_indices = @transform_3, window_bounds = array<i64: 32, 16>}, {pipeline_mode = #tpu.pipeline_mode<synchronous>, transform_indices = @transform_4, window_bounds = array<i64: 8, 16>}, {pipeline_mode = #tpu.pipeline_mode<synchronous>, transform_indices = @transform_5, window_bounds = array<i64: 16, 8>}, {pipeline_mode = #tpu.pipeline_mode<synchronous>, transform_indices = @transform_6, window_bounds = array<i64: 4, 8>}, {pipeline_mode = #tpu.pipeline_mode<synchronous>, transform_indices = @transform_7, window_bounds = array<i64: 8, 4>}, {transform_indices = @transform_8, window_bounds = array<i64: 1, 1, 1>}]} {
    %c0 = arith.constant 0 : index
    %c0_0 = arith.constant 0 : index
    %c0_1 = arith.constant 0 : index
    %0 = vector.load %arg3[%c0, %c0_0, %c0_1] : memref<1x32x32xf32, #tpu.memory_space<vmem>>, vector<1x32x32xf32>
    %1 = vector.shape_cast %0 : vector<1x32x32xf32> to vector<32x32xf32>
    %c0_2 = arith.constant 0 : index
    %c0_3 = arith.constant 0 : index
    %c0_4 = arith.constant 0 : index
    %2 = vector.load %arg4[%c0_2, %c0_3, %c0_4] : memref<1x32x32xf32, #tpu.memory_space<vmem>>, vector<1x32x32xf32>
    %3 = vector.shape_cast %2 : vector<1x32x32xf32> to vector<32x32xf32>
    %4 = arith.index_cast %arg0 : i32 to index
    %5 = memref.load %arg1[%4] : memref<2xf32, #tpu.memory_space<smem>>
    %6 = vector.broadcast %5 : f32 to vector<32x32xf32>
    %7 = arith.subf %1, %6 : vector<32x32xf32>
    %8 = arith.index_cast %arg0 : i32 to index
    %9 = memref.load %arg2[%8] : memref<2xf32, #tpu.memory_space<smem>>
    %10 = vector.broadcast %9 : f32 to vector<32x32xf32>
    %11 = arith.subf %3, %10 : vector<32x32xf32>
    %12 = math.absf %7 : vector<32x32xf32>
    %13 = vector.shape_cast %12 : vector<32x32xf32> to vector<1x32x32xf32>
    %cst = arith.constant dense<0.000000e+00> : vector<1xf32>
    %14 = vector.multi_reduction <add>, %13, %cst [1, 2] : vector<1x32x32xf32> to vector<1xf32>
    %15 = vector.shape_cast %14 : vector<1xf32> to vector<1x1x1xf32>
    %16 = vector.extract %15[0, 0, 0] : f32 from vector<1x1x1xf32>
    %17 = vector.broadcast %16 : f32 to vector<1x1xf32>
    %cst_5 = arith.constant 1.024000e+03 : f32
    %18 = vector.broadcast %cst_5 : f32 to vector<1x1xf32>
    %19 = arith.divf %17, %18 : vector<1x1xf32>
    %20 = math.absf %11 : vector<32x32xf32>
    %21 = vector.shape_cast %20 : vector<32x32xf32> to vector<1x32x32xf32>
    %cst_6 = arith.constant dense<0.000000e+00> : vector<1xf32>
    %22 = vector.multi_reduction <add>, %21, %cst_6 [1, 2] : vector<1x32x32xf32> to vector<1xf32>
    %23 = vector.shape_cast %22 : vector<1xf32> to vector<1x1x1xf32>
    %24 = vector.extract %23[0, 0, 0] : f32 from vector<1x1x1xf32>
    %25 = vector.broadcast %24 : f32 to vector<1x1xf32>
    %cst_7 = arith.constant 1.024000e+03 : f32
    %26 = vector.broadcast %cst_7 : f32 to vector<1x1xf32>
    %27 = arith.divf %25, %26 : vector<1x1xf32>
    %cst_8 = arith.constant 1.000000e+00 : f32
    %28 = vector.broadcast %cst_8 : f32 to vector<1x1xf32>
    %29 = arith.divf %28, %19 : vector<1x1xf32>
    %30 = vector.broadcast %29 : vector<1x1xf32> to vector<32x32xf32>
    %31 = arith.mulf %7, %30 : vector<32x32xf32>
    %cst_9 = arith.constant 1.000000e+00 : f32
    %32 = vector.broadcast %cst_9 : f32 to vector<1x1xf32>
    %33 = arith.divf %32, %27 : vector<1x1xf32>
    %34 = vector.broadcast %33 : vector<1x1xf32> to vector<32x32xf32>
    %35 = arith.mulf %11, %34 : vector<32x32xf32>
    %36 = arith.subf %31, %35 : vector<32x32xf32>
    %37 = math.absf %36 : vector<32x32xf32>
    %38 = vector.shape_cast %37 : vector<32x32xf32> to vector<1x32x32xf32>
    %cst_10 = arith.constant dense<0.000000e+00> : vector<1xf32>
    %39 = vector.multi_reduction <add>, %38, %cst_10 [1, 2] : vector<1x32x32xf32> to vector<1xf32>
    %40 = vector.shape_cast %39 : vector<1xf32> to vector<1x1x1xf32>
    %41 = vector.extract %40[0, 0, 0] : f32 from vector<1x1x1xf32>
    %42 = vector.broadcast %41 : f32 to vector<1x1xf32>
    %cst_11 = arith.constant 1.024000e+03 : f32
    %43 = vector.broadcast %cst_11 : f32 to vector<1x1xf32>
    %44 = arith.divf %42, %43 : vector<1x1xf32>
    %cst_12 = arith.constant 5.000000e-01 : f32
    %45 = vector.broadcast %cst_12 : f32 to vector<1x1xf32>
    %46 = arith.mulf %45, %44 : vector<1x1xf32>
    %47 = tpu.concatenate %31, %35 in 0 : vector<32x32xf32>, vector<32x32xf32> -> vector<64x32xf32>
    %48 = vector.extract_strided_slice %47 {offsets = [0, 0], sizes = [64, 30], strides = [1, 1]} : vector<64x32xf32> to vector<64x30xf32>
    %49 = vector.extract_strided_slice %47 {offsets = [0, 2], sizes = [64, 30], strides = [1, 1]} : vector<64x32xf32> to vector<64x30xf32>
    %50 = arith.subf %48, %49 : vector<64x30xf32>
    %51 = vector.extract_strided_slice %50 {offsets = [0, 0], sizes = [62, 30], strides = [1, 1]} : vector<64x30xf32> to vector<62x30xf32>
    %cst_13 = arith.constant 3.000000e+00 : f32
    %52 = vector.broadcast %cst_13 : f32 to vector<62x30xf32>
    %53 = arith.mulf %52, %51 : vector<62x30xf32>
    %54 = vector.extract_strided_slice %50 {offsets = [1, 0], sizes = [62, 30], strides = [1, 1]} : vector<64x30xf32> to vector<62x30xf32>
    %cst_14 = arith.constant 1.000000e+01 : f32
    %55 = vector.broadcast %cst_14 : f32 to vector<62x30xf32>
    %56 = arith.mulf %55, %54 : vector<62x30xf32>
    %57 = arith.addf %53, %56 : vector<62x30xf32>
    %58 = vector.extract_strided_slice %50 {offsets = [2, 0], sizes = [62, 30], strides = [1, 1]} : vector<64x30xf32> to vector<62x30xf32>
    %cst_15 = arith.constant 3.000000e+00 : f32
    %59 = vector.broadcast %cst_15 : f32 to vector<62x30xf32>
    %60 = arith.mulf %59, %58 : vector<62x30xf32>
    %61 = arith.addf %57, %60 : vector<62x30xf32>
    %62 = vector.extract_strided_slice %47 {offsets = [0, 0], sizes = [64, 30], strides = [1, 1]} : vector<64x32xf32> to vector<64x30xf32>
    %cst_16 = arith.constant 3.000000e+00 : f32
    %63 = vector.broadcast %cst_16 : f32 to vector<64x30xf32>
    %64 = arith.mulf %63, %62 : vector<64x30xf32>
    %65 = vector.extract_strided_slice %47 {offsets = [0, 1], sizes = [64, 30], strides = [1, 1]} : vector<64x32xf32> to vector<64x30xf32>
    %cst_17 = arith.constant 1.000000e+01 : f32
    %66 = vector.broadcast %cst_17 : f32 to vector<64x30xf32>
    %67 = arith.mulf %66, %65 : vector<64x30xf32>
    %68 = arith.addf %64, %67 : vector<64x30xf32>
    %69 = vector.extract_strided_slice %47 {offsets = [0, 2], sizes = [64, 30], strides = [1, 1]} : vector<64x32xf32> to vector<64x30xf32>
    %cst_18 = arith.constant 3.000000e+00 : f32
    %70 = vector.broadcast %cst_18 : f32 to vector<64x30xf32>
    %71 = arith.mulf %70, %69 : vector<64x30xf32>
    %72 = arith.addf %68, %71 : vector<64x30xf32>
    %73 = vector.extract_strided_slice %72 {offsets = [0, 0], sizes = [62, 30], strides = [1, 1]} : vector<64x30xf32> to vector<62x30xf32>
    %74 = vector.extract_strided_slice %72 {offsets = [2, 0], sizes = [62, 30], strides = [1, 1]} : vector<64x30xf32> to vector<62x30xf32>
    %75 = arith.subf %73, %74 : vector<62x30xf32>
    %76 = arith.mulf %61, %61 : vector<62x30xf32>
    %77 = arith.mulf %75, %75 : vector<62x30xf32>
    %78 = arith.addf %76, %77 : vector<62x30xf32>
    %79 = math.sqrt %78 : vector<62x30xf32>
    %80 = vector.extract_strided_slice %79 {offsets = [0, 0], sizes = [30, 30], strides = [1, 1]} : vector<62x30xf32> to vector<30x30xf32>
    %81 = vector.extract_strided_slice %79 {offsets = [32, 0], sizes = [30, 30], strides = [1, 1]} : vector<62x30xf32> to vector<30x30xf32>
    %82 = arith.subf %80, %81 : vector<30x30xf32>
    %83 = math.absf %82 : vector<30x30xf32>
    %84 = vector.shape_cast %83 : vector<30x30xf32> to vector<1x30x30xf32>
    %cst_19 = arith.constant dense<0.000000e+00> : vector<1xf32>
    %85 = vector.multi_reduction <add>, %84, %cst_19 [1, 2] : vector<1x30x30xf32> to vector<1xf32>
    %86 = vector.shape_cast %85 : vector<1xf32> to vector<1x1x1xf32>
    %87 = vector.extract %86[0, 0, 0] : f32 from vector<1x1x1xf32>
    %88 = vector.broadcast %87 : f32 to vector<1x1xf32>
    %cst_20 = arith.constant 9.000000e+02 : f32
    %89 = vector.broadcast %cst_20 : f32 to vector<1x1xf32>
    %90 = arith.divf %88, %89 : vector<1x1xf32>
    %c0_21 = arith.constant 0 : index
    %c0_22 = arith.constant 0 : index
    %91 = vector.load %arg5[%c0_21, %c0_22] : memref<16x32xbf16, #tpu.memory_space<vmem>>, vector<16x32xbf16>
    %c0_23 = arith.constant 0 : index
    %c0_24 = arith.constant 0 : index
    %92 = vector.load %arg6[%c0_23, %c0_24] : memref<32x16xbf16, #tpu.memory_space<vmem>>, vector<32x16xbf16>
    %93 = arith.truncf %47 : vector<64x32xf32> to vector<64x32xbf16>
    %cst_25 = arith.constant dense<0.000000e+00> : vector<64x16xf32>
    %94 = tpu.matmul %93, %92, %cst_25 {dimension_numbers = #tpu.dot_dimension_numbers<[1], [0], [0], [1], [0, 0, 1, 1], [], []>} : vector<64x32xbf16>, vector<32x16xbf16>, vector<64x16xf32> -> vector<64x16xf32>
    %95 = vector.extract_strided_slice %94 {offsets = [0, 0], sizes = [32, 16], strides = [1, 1]} : vector<64x16xf32> to vector<32x16xf32>
    %96 = vector.extract_strided_slice %94 {offsets = [32, 0], sizes = [32, 16], strides = [1, 1]} : vector<64x16xf32> to vector<32x16xf32>
    %97 = tpu.concatenate %95, %96 in 1 : vector<32x16xf32>, vector<32x16xf32> -> vector<32x32xf32>
    %98 = arith.truncf %97 : vector<32x32xf32> to vector<32x32xbf16>
    %cst_26 = arith.constant dense<0.000000e+00> : vector<16x32xf32>
    %99 = tpu.matmul %91, %98, %cst_26 {dimension_numbers = #tpu.dot_dimension_numbers<[1], [0], [0], [1], [0, 0, 1, 1], [], []>} : vector<16x32xbf16>, vector<32x32xbf16>, vector<16x32xf32> -> vector<16x32xf32>
    %100 = vector.extract_strided_slice %99 {offsets = [0, 0], sizes = [16, 16], strides = [1, 1]} : vector<16x32xf32> to vector<16x16xf32>
    %101 = vector.extract_strided_slice %99 {offsets = [0, 16], sizes = [16, 16], strides = [1, 1]} : vector<16x32xf32> to vector<16x16xf32>
    %102 = tpu.concatenate %100, %101 in 0 : vector<16x16xf32>, vector<16x16xf32> -> vector<32x16xf32>
    %103 = vector.extract_strided_slice %102 {offsets = [0, 0], sizes = [32, 14], strides = [1, 1]} : vector<32x16xf32> to vector<32x14xf32>
    %104 = vector.extract_strided_slice %102 {offsets = [0, 2], sizes = [32, 14], strides = [1, 1]} : vector<32x16xf32> to vector<32x14xf32>
    %105 = arith.subf %103, %104 : vector<32x14xf32>
    %106 = vector.extract_strided_slice %105 {offsets = [0, 0], sizes = [30, 14], strides = [1, 1]} : vector<32x14xf32> to vector<30x14xf32>
    %cst_27 = arith.constant 3.000000e+00 : f32
    %107 = vector.broadcast %cst_27 : f32 to vector<30x14xf32>
    %108 = arith.mulf %107, %106 : vector<30x14xf32>
    %109 = vector.extract_strided_slice %105 {offsets = [1, 0], sizes = [30, 14], strides = [1, 1]} : vector<32x14xf32> to vector<30x14xf32>
    %cst_28 = arith.constant 1.000000e+01 : f32
    %110 = vector.broadcast %cst_28 : f32 to vector<30x14xf32>
    %111 = arith.mulf %110, %109 : vector<30x14xf32>
    %112 = arith.addf %108, %111 : vector<30x14xf32>
    %113 = vector.extract_strided_slice %105 {offsets = [2, 0], sizes = [30, 14], strides = [1, 1]} : vector<32x14xf32> to vector<30x14xf32>
    %cst_29 = arith.constant 3.000000e+00 : f32
    %114 = vector.broadcast %cst_29 : f32 to vector<30x14xf32>
    %115 = arith.mulf %114, %113 : vector<30x14xf32>
    %116 = arith.addf %112, %115 : vector<30x14xf32>
    %117 = vector.extract_strided_slice %102 {offsets = [0, 0], sizes = [32, 14], strides = [1, 1]} : vector<32x16xf32> to vector<32x14xf32>
    %cst_30 = arith.constant 3.000000e+00 : f32
    %118 = vector.broadcast %cst_30 : f32 to vector<32x14xf32>
    %119 = arith.mulf %118, %117 : vector<32x14xf32>
    %120 = vector.extract_strided_slice %102 {offsets = [0, 1], sizes = [32, 14], strides = [1, 1]} : vector<32x16xf32> to vector<32x14xf32>
    %cst_31 = arith.constant 1.000000e+01 : f32
    %121 = vector.broadcast %cst_31 : f32 to vector<32x14xf32>
    %122 = arith.mulf %121, %120 : vector<32x14xf32>
    %123 = arith.addf %119, %122 : vector<32x14xf32>
    %124 = vector.extract_strided_slice %102 {offsets = [0, 2], sizes = [32, 14], strides = [1, 1]} : vector<32x16xf32> to vector<32x14xf32>
    %cst_32 = arith.constant 3.000000e+00 : f32
    %125 = vector.broadcast %cst_32 : f32 to vector<32x14xf32>
    %126 = arith.mulf %125, %124 : vector<32x14xf32>
    %127 = arith.addf %123, %126 : vector<32x14xf32>
    %128 = vector.extract_strided_slice %127 {offsets = [0, 0], sizes = [30, 14], strides = [1, 1]} : vector<32x14xf32> to vector<30x14xf32>
    %129 = vector.extract_strided_slice %127 {offsets = [2, 0], sizes = [30, 14], strides = [1, 1]} : vector<32x14xf32> to vector<30x14xf32>
    %130 = arith.subf %128, %129 : vector<30x14xf32>
    %131 = arith.mulf %116, %116 : vector<30x14xf32>
    %132 = arith.mulf %130, %130 : vector<30x14xf32>
    %133 = arith.addf %131, %132 : vector<30x14xf32>
    %134 = math.sqrt %133 : vector<30x14xf32>
    %135 = vector.extract_strided_slice %134 {offsets = [0, 0], sizes = [14, 14], strides = [1, 1]} : vector<30x14xf32> to vector<14x14xf32>
    %136 = vector.extract_strided_slice %134 {offsets = [16, 0], sizes = [14, 14], strides = [1, 1]} : vector<30x14xf32> to vector<14x14xf32>
    %137 = arith.subf %135, %136 : vector<14x14xf32>
    %138 = math.absf %137 : vector<14x14xf32>
    %139 = vector.shape_cast %138 : vector<14x14xf32> to vector<1x14x14xf32>
    %cst_33 = arith.constant dense<0.000000e+00> : vector<1xf32>
    %140 = vector.multi_reduction <add>, %139, %cst_33 [1, 2] : vector<1x14x14xf32> to vector<1xf32>
    %141 = vector.shape_cast %140 : vector<1xf32> to vector<1x1x1xf32>
    %142 = vector.extract %141[0, 0, 0] : f32 from vector<1x1x1xf32>
    %143 = vector.broadcast %142 : f32 to vector<1x1xf32>
    %cst_34 = arith.constant 1.960000e+02 : f32
    %144 = vector.broadcast %cst_34 : f32 to vector<1x1xf32>
    %145 = arith.divf %143, %144 : vector<1x1xf32>
    %146 = arith.addf %90, %145 : vector<1x1xf32>
    %c0_35 = arith.constant 0 : index
    %c0_36 = arith.constant 0 : index
    %147 = vector.load %arg7[%c0_35, %c0_36] : memref<8x16xbf16, #tpu.memory_space<vmem>>, vector<8x16xbf16>
    %c0_37 = arith.constant 0 : index
    %c0_38 = arith.constant 0 : index
    %148 = vector.load %arg8[%c0_37, %c0_38] : memref<16x8xbf16, #tpu.memory_space<vmem>>, vector<16x8xbf16>
    %149 = arith.truncf %102 : vector<32x16xf32> to vector<32x16xbf16>
    %cst_39 = arith.constant dense<0.000000e+00> : vector<32x8xf32>
    %150 = tpu.matmul %149, %148, %cst_39 {dimension_numbers = #tpu.dot_dimension_numbers<[1], [0], [0], [1], [0, 0, 1, 1], [], []>} : vector<32x16xbf16>, vector<16x8xbf16>, vector<32x8xf32> -> vector<32x8xf32>
    %151 = vector.extract_strided_slice %150 {offsets = [0, 0], sizes = [16, 8], strides = [1, 1]} : vector<32x8xf32> to vector<16x8xf32>
    %152 = vector.extract_strided_slice %150 {offsets = [16, 0], sizes = [16, 8], strides = [1, 1]} : vector<32x8xf32> to vector<16x8xf32>
    %153 = tpu.concatenate %151, %152 in 1 : vector<16x8xf32>, vector<16x8xf32> -> vector<16x16xf32>
    %154 = arith.truncf %153 : vector<16x16xf32> to vector<16x16xbf16>
    %cst_40 = arith.constant dense<0.000000e+00> : vector<8x16xf32>
    %155 = tpu.matmul %147, %154, %cst_40 {dimension_numbers = #tpu.dot_dimension_numbers<[1], [0], [0], [1], [0, 0, 1, 1], [], []>} : vector<8x16xbf16>, vector<16x16xbf16>, vector<8x16xf32> -> vector<8x16xf32>
    %156 = vector.extract_strided_slice %155 {offsets = [0, 0], sizes = [8, 8], strides = [1, 1]} : vector<8x16xf32> to vector<8x8xf32>
    %157 = vector.extract_strided_slice %155 {offsets = [0, 8], sizes = [8, 8], strides = [1, 1]} : vector<8x16xf32> to vector<8x8xf32>
    %158 = tpu.concatenate %156, %157 in 0 : vector<8x8xf32>, vector<8x8xf32> -> vector<16x8xf32>
    %159 = vector.extract_strided_slice %158 {offsets = [0, 0], sizes = [16, 6], strides = [1, 1]} : vector<16x8xf32> to vector<16x6xf32>
    %160 = vector.extract_strided_slice %158 {offsets = [0, 2], sizes = [16, 6], strides = [1, 1]} : vector<16x8xf32> to vector<16x6xf32>
    %161 = arith.subf %159, %160 : vector<16x6xf32>
    %162 = vector.extract_strided_slice %161 {offsets = [0, 0], sizes = [14, 6], strides = [1, 1]} : vector<16x6xf32> to vector<14x6xf32>
    %cst_41 = arith.constant 3.000000e+00 : f32
    %163 = vector.broadcast %cst_41 : f32 to vector<14x6xf32>
    %164 = arith.mulf %163, %162 : vector<14x6xf32>
    %165 = vector.extract_strided_slice %161 {offsets = [1, 0], sizes = [14, 6], strides = [1, 1]} : vector<16x6xf32> to vector<14x6xf32>
    %cst_42 = arith.constant 1.000000e+01 : f32
    %166 = vector.broadcast %cst_42 : f32 to vector<14x6xf32>
    %167 = arith.mulf %166, %165 : vector<14x6xf32>
    %168 = arith.addf %164, %167 : vector<14x6xf32>
    %169 = vector.extract_strided_slice %161 {offsets = [2, 0], sizes = [14, 6], strides = [1, 1]} : vector<16x6xf32> to vector<14x6xf32>
    %cst_43 = arith.constant 3.000000e+00 : f32
    %170 = vector.broadcast %cst_43 : f32 to vector<14x6xf32>
    %171 = arith.mulf %170, %169 : vector<14x6xf32>
    %172 = arith.addf %168, %171 : vector<14x6xf32>
    %173 = vector.extract_strided_slice %158 {offsets = [0, 0], sizes = [16, 6], strides = [1, 1]} : vector<16x8xf32> to vector<16x6xf32>
    %cst_44 = arith.constant 3.000000e+00 : f32
    %174 = vector.broadcast %cst_44 : f32 to vector<16x6xf32>
    %175 = arith.mulf %174, %173 : vector<16x6xf32>
    %176 = vector.extract_strided_slice %158 {offsets = [0, 1], sizes = [16, 6], strides = [1, 1]} : vector<16x8xf32> to vector<16x6xf32>
    %cst_45 = arith.constant 1.000000e+01 : f32
    %177 = vector.broadcast %cst_45 : f32 to vector<16x6xf32>
    %178 = arith.mulf %177, %176 : vector<16x6xf32>
    %179 = arith.addf %175, %178 : vector<16x6xf32>
    %180 = vector.extract_strided_slice %158 {offsets = [0, 2], sizes = [16, 6], strides = [1, 1]} : vector<16x8xf32> to vector<16x6xf32>
    %cst_46 = arith.constant 3.000000e+00 : f32
    %181 = vector.broadcast %cst_46 : f32 to vector<16x6xf32>
    %182 = arith.mulf %181, %180 : vector<16x6xf32>
    %183 = arith.addf %179, %182 : vector<16x6xf32>
    %184 = vector.extract_strided_slice %183 {offsets = [0, 0], sizes = [14, 6], strides = [1, 1]} : vector<16x6xf32> to vector<14x6xf32>
    %185 = vector.extract_strided_slice %183 {offsets = [2, 0], sizes = [14, 6], strides = [1, 1]} : vector<16x6xf32> to vector<14x6xf32>
    %186 = arith.subf %184, %185 : vector<14x6xf32>
    %187 = arith.mulf %172, %172 : vector<14x6xf32>
    %188 = arith.mulf %186, %186 : vector<14x6xf32>
    %189 = arith.addf %187, %188 : vector<14x6xf32>
    %190 = math.sqrt %189 : vector<14x6xf32>
    %191 = vector.extract_strided_slice %190 {offsets = [0, 0], sizes = [6, 6], strides = [1, 1]} : vector<14x6xf32> to vector<6x6xf32>
    %192 = vector.extract_strided_slice %190 {offsets = [8, 0], sizes = [6, 6], strides = [1, 1]} : vector<14x6xf32> to vector<6x6xf32>
    %193 = arith.subf %191, %192 : vector<6x6xf32>
    %194 = math.absf %193 : vector<6x6xf32>
    %195 = vector.shape_cast %194 : vector<6x6xf32> to vector<1x6x6xf32>
    %cst_47 = arith.constant dense<0.000000e+00> : vector<1xf32>
    %196 = vector.multi_reduction <add>, %195, %cst_47 [1, 2] : vector<1x6x6xf32> to vector<1xf32>
    %197 = vector.shape_cast %196 : vector<1xf32> to vector<1x1x1xf32>
    %198 = vector.extract %197[0, 0, 0] : f32 from vector<1x1x1xf32>
    %199 = vector.broadcast %198 : f32 to vector<1x1xf32>
    %cst_48 = arith.constant 3.600000e+01 : f32
    %200 = vector.broadcast %cst_48 : f32 to vector<1x1xf32>
    %201 = arith.divf %199, %200 : vector<1x1xf32>
    %202 = arith.addf %146, %201 : vector<1x1xf32>
    %c0_49 = arith.constant 0 : index
    %c0_50 = arith.constant 0 : index
    %203 = vector.load %arg9[%c0_49, %c0_50] : memref<4x8xbf16, #tpu.memory_space<vmem>>, vector<4x8xbf16>
    %c0_51 = arith.constant 0 : index
    %c0_52 = arith.constant 0 : index
    %204 = vector.load %arg10[%c0_51, %c0_52] : memref<8x4xbf16, #tpu.memory_space<vmem>>, vector<8x4xbf16>
    %205 = arith.truncf %158 : vector<16x8xf32> to vector<16x8xbf16>
    %cst_53 = arith.constant dense<0.000000e+00> : vector<16x4xf32>
    %206 = tpu.matmul %205, %204, %cst_53 {dimension_numbers = #tpu.dot_dimension_numbers<[1], [0], [0], [1], [0, 0, 1, 1], [], []>} : vector<16x8xbf16>, vector<8x4xbf16>, vector<16x4xf32> -> vector<16x4xf32>
    %207 = vector.extract_strided_slice %206 {offsets = [0, 0], sizes = [8, 4], strides = [1, 1]} : vector<16x4xf32> to vector<8x4xf32>
    %208 = vector.extract_strided_slice %206 {offsets = [8, 0], sizes = [8, 4], strides = [1, 1]} : vector<16x4xf32> to vector<8x4xf32>
    %209 = tpu.concatenate %207, %208 in 1 : vector<8x4xf32>, vector<8x4xf32> -> vector<8x8xf32>
    %210 = arith.truncf %209 : vector<8x8xf32> to vector<8x8xbf16>
    %cst_54 = arith.constant dense<0.000000e+00> : vector<4x8xf32>
    %211 = tpu.matmul %203, %210, %cst_54 {dimension_numbers = #tpu.dot_dimension_numbers<[1], [0], [0], [1], [0, 0, 1, 1], [], []>} : vector<4x8xbf16>, vector<8x8xbf16>, vector<4x8xf32> -> vector<4x8xf32>
    %212 = vector.extract_strided_slice %211 {offsets = [0, 0], sizes = [4, 4], strides = [1, 1]} : vector<4x8xf32> to vector<4x4xf32>
    %213 = vector.extract_strided_slice %211 {offsets = [0, 4], sizes = [4, 4], strides = [1, 1]} : vector<4x8xf32> to vector<4x4xf32>
    %214 = tpu.concatenate %212, %213 in 0 : vector<4x4xf32>, vector<4x4xf32> -> vector<8x4xf32>
    %215 = vector.extract_strided_slice %214 {offsets = [0, 0], sizes = [8, 2], strides = [1, 1]} : vector<8x4xf32> to vector<8x2xf32>
    %216 = vector.extract_strided_slice %214 {offsets = [0, 2], sizes = [8, 2], strides = [1, 1]} : vector<8x4xf32> to vector<8x2xf32>
    %217 = arith.subf %215, %216 : vector<8x2xf32>
    %218 = vector.extract_strided_slice %217 {offsets = [0, 0], sizes = [6, 2], strides = [1, 1]} : vector<8x2xf32> to vector<6x2xf32>
    %cst_55 = arith.constant 3.000000e+00 : f32
    %219 = vector.broadcast %cst_55 : f32 to vector<6x2xf32>
    %220 = arith.mulf %219, %218 : vector<6x2xf32>
    %221 = vector.extract_strided_slice %217 {offsets = [1, 0], sizes = [6, 2], strides = [1, 1]} : vector<8x2xf32> to vector<6x2xf32>
    %cst_56 = arith.constant 1.000000e+01 : f32
    %222 = vector.broadcast %cst_56 : f32 to vector<6x2xf32>
    %223 = arith.mulf %222, %221 : vector<6x2xf32>
    %224 = arith.addf %220, %223 : vector<6x2xf32>
    %225 = vector.extract_strided_slice %217 {offsets = [2, 0], sizes = [6, 2], strides = [1, 1]} : vector<8x2xf32> to vector<6x2xf32>
    %cst_57 = arith.constant 3.000000e+00 : f32
    %226 = vector.broadcast %cst_57 : f32 to vector<6x2xf32>
    %227 = arith.mulf %226, %225 : vector<6x2xf32>
    %228 = arith.addf %224, %227 : vector<6x2xf32>
    %229 = vector.extract_strided_slice %214 {offsets = [0, 0], sizes = [8, 2], strides = [1, 1]} : vector<8x4xf32> to vector<8x2xf32>
    %cst_58 = arith.constant 3.000000e+00 : f32
    %230 = vector.broadcast %cst_58 : f32 to vector<8x2xf32>
    %231 = arith.mulf %230, %229 : vector<8x2xf32>
    %232 = vector.extract_strided_slice %214 {offsets = [0, 1], sizes = [8, 2], strides = [1, 1]} : vector<8x4xf32> to vector<8x2xf32>
    %cst_59 = arith.constant 1.000000e+01 : f32
    %233 = vector.broadcast %cst_59 : f32 to vector<8x2xf32>
    %234 = arith.mulf %233, %232 : vector<8x2xf32>
    %235 = arith.addf %231, %234 : vector<8x2xf32>
    %236 = vector.extract_strided_slice %214 {offsets = [0, 2], sizes = [8, 2], strides = [1, 1]} : vector<8x4xf32> to vector<8x2xf32>
    %cst_60 = arith.constant 3.000000e+00 : f32
    %237 = vector.broadcast %cst_60 : f32 to vector<8x2xf32>
    %238 = arith.mulf %237, %236 : vector<8x2xf32>
    %239 = arith.addf %235, %238 : vector<8x2xf32>
    %240 = vector.extract_strided_slice %239 {offsets = [0, 0], sizes = [6, 2], strides = [1, 1]} : vector<8x2xf32> to vector<6x2xf32>
    %241 = vector.extract_strided_slice %239 {offsets = [2, 0], sizes = [6, 2], strides = [1, 1]} : vector<8x2xf32> to vector<6x2xf32>
    %242 = arith.subf %240, %241 : vector<6x2xf32>
    %243 = arith.mulf %228, %228 : vector<6x2xf32>
    %244 = arith.mulf %242, %242 : vector<6x2xf32>
    %245 = arith.addf %243, %244 : vector<6x2xf32>
    %246 = math.sqrt %245 : vector<6x2xf32>
    %247 = vector.extract_strided_slice %246 {offsets = [0, 0], sizes = [2, 2], strides = [1, 1]} : vector<6x2xf32> to vector<2x2xf32>
    %248 = vector.extract_strided_slice %246 {offsets = [4, 0], sizes = [2, 2], strides = [1, 1]} : vector<6x2xf32> to vector<2x2xf32>
    %249 = arith.subf %247, %248 : vector<2x2xf32>
    %250 = math.absf %249 : vector<2x2xf32>
    %251 = vector.shape_cast %250 : vector<2x2xf32> to vector<1x2x2xf32>
    %cst_61 = arith.constant dense<0.000000e+00> : vector<1xf32>
    %252 = vector.multi_reduction <add>, %251, %cst_61 [1, 2] : vector<1x2x2xf32> to vector<1xf32>
    %253 = vector.shape_cast %252 : vector<1xf32> to vector<1x1x1xf32>
    %254 = vector.extract %253[0, 0, 0] : f32 from vector<1x1x1xf32>
    %255 = vector.broadcast %254 : f32 to vector<1x1xf32>
    %cst_62 = arith.constant 4.000000e+00 : f32
    %256 = vector.broadcast %cst_62 : f32 to vector<1x1xf32>
    %257 = arith.divf %255, %256 : vector<1x1xf32>
    %258 = arith.addf %202, %257 : vector<1x1xf32>
    %cst_63 = arith.constant 2.500000e-01 : f32
    %259 = vector.broadcast %cst_63 : f32 to vector<1x1xf32>
    %260 = arith.mulf %258, %259 : vector<1x1xf32>
    %cst_64 = arith.constant 5.000000e-01 : f32
    %261 = vector.broadcast %cst_64 : f32 to vector<1x1xf32>
    %262 = arith.mulf %261, %260 : vector<1x1xf32>
    %263 = arith.addf %46, %262 : vector<1x1xf32>
    %c0_65 = arith.constant 0 : index
    %c0_66 = arith.constant 0 : index
    %c0_67 = arith.constant 0 : index
    %264 = vector.load %arg11[%c0_65, %c0_66, %c0_67] : memref<1x1x1xf32, #tpu.memory_space<vmem>>, vector<1x1x1xf32>
    %265 = vector.shape_cast %264 : vector<1x1x1xf32> to vector<1x1xf32>
    %266 = vector.shape_cast %263 : vector<1x1xf32> to vector<1x1x1xf32>
    tpu.vector_store %arg11[%c0_65, %c0_66, %c0_67], %266 {strides = array<i32>} : memref<1x1x1xf32, #tpu.memory_space<vmem>>, vector<1x1x1xf32>,
    return
  }
  func.func @transform_0(%arg0: i32, %arg1: memref<2xf32, #tpu.memory_space<smem>>, %arg2: memref<2xf32, #tpu.memory_space<smem>>) -> (i32, i32, i32) {
    %c0_i32 = arith.constant 0 : i32
    %c0_i32_0 = arith.constant 0 : i32
    %c0_i32_1 = arith.constant 0 : i32
    return %arg0, %c0_i32, %c0_i32_0 : i32, i32, i32
  }
  func.func @transform_1(%arg0: i32, %arg1: memref<2xf32, #tpu.memory_space<smem>>, %arg2: memref<2xf32, #tpu.memory_space<smem>>) -> (i32, i32, i32) {
    %c0_i32 = arith.constant 0 : i32
    %c0_i32_0 = arith.constant 0 : i32
    %c0_i32_1 = arith.constant 0 : i32
    return %arg0, %c0_i32, %c0_i32_0 : i32, i32, i32
  }
  func.func @transform_2(%arg0: i32, %arg1: memref<2xf32, #tpu.memory_space<smem>>, %arg2: memref<2xf32, #tpu.memory_space<smem>>) -> (i32, i32) {
    %c0_i32 = arith.constant 0 : i32
    %c0_i32_0 = arith.constant 0 : i32
    %c0_i32_1 = arith.constant 0 : i32
    return %c0_i32, %c0_i32_0 : i32, i32
  }
  func.func @transform_3(%arg0: i32, %arg1: memref<2xf32, #tpu.memory_space<smem>>, %arg2: memref<2xf32, #tpu.memory_space<smem>>) -> (i32, i32) {
    %c0_i32 = arith.constant 0 : i32
    %c0_i32_0 = arith.constant 0 : i32
    %c0_i32_1 = arith.constant 0 : i32
    return %c0_i32, %c0_i32_0 : i32, i32
  }
  func.func @transform_4(%arg0: i32, %arg1: memref<2xf32, #tpu.memory_space<smem>>, %arg2: memref<2xf32, #tpu.memory_space<smem>>) -> (i32, i32) {
    %c0_i32 = arith.constant 0 : i32
    %c0_i32_0 = arith.constant 0 : i32
    %c0_i32_1 = arith.constant 0 : i32
    return %c0_i32, %c0_i32_0 : i32, i32
  }
  func.func @transform_5(%arg0: i32, %arg1: memref<2xf32, #tpu.memory_space<smem>>, %arg2: memref<2xf32, #tpu.memory_space<smem>>) -> (i32, i32) {
    %c0_i32 = arith.constant 0 : i32
    %c0_i32_0 = arith.constant 0 : i32
    %c0_i32_1 = arith.constant 0 : i32
    return %c0_i32, %c0_i32_0 : i32, i32
  }
  func.func @transform_6(%arg0: i32, %arg1: memref<2xf32, #tpu.memory_space<smem>>, %arg2: memref<2xf32, #tpu.memory_space<smem>>) -> (i32, i32) {
    %c0_i32 = arith.constant 0 : i32
    %c0_i32_0 = arith.constant 0 : i32
    %c0_i32_1 = arith.constant 0 : i32
    return %c0_i32, %c0_i32_0 : i32, i32
  }
  func.func @transform_7(%arg0: i32, %arg1: memref<2xf32, #tpu.memory_space<smem>>, %arg2: memref<2xf32, #tpu.memory_space<smem>>) -> (i32, i32) {
    %c0_i32 = arith.constant 0 : i32
    %c0_i32_0 = arith.constant 0 : i32
    %c0_i32_1 = arith.constant 0 : i32
    return %c0_i32, %c0_i32_0 : i32, i32
  }
  func.func @transform_8(%arg0: i32, %arg1: memref<2xf32, #tpu.memory_space<smem>>, %arg2: memref<2xf32, #tpu.memory_space<smem>>) -> (i32, i32, i32) {
    %c0_i32 = arith.constant 0 : i32
    %c0_i32_0 = arith.constant 0 : i32
    %c0_i32_1 = arith.constant 0 : i32
    return %arg0, %c0_i32, %c0_i32_0 : i32, i32, i32
  }
}

</mosaic_0001>

<llo_original>
// kernel: ssimae_loss.1
$region0: #{ssimae_loss.1}
  #allocation0 [shape = 'u32[]', space=smem, size = 0x4, offset = 0x4, fixed_abs, tag = 'smem constant byte address 0x4 - core index']
  #allocation1 [shape = 'u32[144,128]{1,0:T(1,128)}', space=vmem, size = 0x12000, scoped, tag = 'internal scratch']
  #allocation2 [shape = 's32[1]{0}', space=sflag, size = 0x4, scoped, tag = 'scoped memory for ssimae_loss.1']
  #allocation3 [shape = 'u8[512]{0}', space=smem, size = 0x200, scoped, tag = 'prefetched SMEM operand 0']
  #allocation4 [shape = 'u8[512]{0}', space=smem, size = 0x200, scoped, tag = 'prefetched SMEM operand 1']
  %s0 = inlined_call_operand.vmem [shape: f32[2], index: 0, kind: input, shape index: {}]
  %s1 = inlined_call_operand.vmem [shape: f32[2], index: 1, kind: input, shape index: {}]
  %s2 = inlined_call_operand.vmem [shape: f32[2,32,32], index: 2, kind: input, shape index: {}]
  %s3 = inlined_call_operand.vmem [shape: f32[2,32,32], index: 3, kind: input, shape index: {}]
  %s4 = inlined_call_operand.vmem [shape: bf16[16,32], index: 4, kind: input, shape index: {}]
  %s5 = inlined_call_operand.vmem [shape: bf16[32,16], index: 5, kind: input, shape index: {}]
  %s6 = inlined_call_operand.vmem [shape: bf16[8,16], index: 6, kind: input, shape index: {}]
  %s7 = inlined_call_operand.vmem [shape: bf16[16,8], index: 7, kind: input, shape index: {}]
  %s8 = inlined_call_operand.vmem [shape: bf16[4,8], index: 8, kind: input, shape index: {}]
  %s9 = inlined_call_operand.vmem [shape: bf16[8,4], index: 9, kind: input, shape index: {}]
  %s10 = inlined_call_operand.vmem [shape: f32[2,1,1], index: 10, kind: output, shape index: {}]
  %s11 = sld [smem:[#allocation0]]
  $region65: #{ssimae_loss.1} parent=0
    _
  %s13 = ssub.s32 1, %s11
  %s14 = scalar_select 0, %s13, %s11
  %s15 = sshll.u32 %s0, 4
  %s16 = int_to_ptr.vmem [resolvable:$true] %s15
  %18 = dma.vmem_to_smem %s16, 16, [#allocation3], [#allocation2]
  %s19 = sshll.u32 %s1, 4
  %s20 = int_to_ptr.vmem [resolvable:$true] %s19
  %22 = dma.vmem_to_smem %s20, 16, [#allocation4], [#allocation2]
  %23 = dma.done [#allocation2], 32
  %24 = sfence
  loop: start=0, step=1, limit=4
  $region2: #{ssimae_loss.1} parent=0 // loop_pre_header
    _
  $region3: #{ssimae_loss.1} parent=0 // loop_header
    %s26 = sphi 0, %s30
    %p27 = scmp.ge.s32.totalorder %s26, 4
    %s36 = sphi 0, %s38
    %s39 = sphi 0, %s36
    %s40 = sphi 0, %s39
    %s56 = sphi 0, %s40
    %s62 = sphi 0, %s64
    %s65 = sphi 0, %s62
    %s66 = sphi 0, %s65
    %s82 = sphi 0, %s66
    %s86 = sphi 0, %s86
    %s88 = sphi 0, %s86
    %s89 = sphi 0, %s88
    %s103 = sphi 0, %s89
    %s107 = sphi 0, %s107
    %s109 = sphi 0, %s107
    %s110 = sphi 0, %s109
    %s124 = sphi 0, %s110
    %s128 = sphi 0, %s128
    %s130 = sphi 0, %s128
    %s131 = sphi 0, %s130
    %s145 = sphi 0, %s131
    %s149 = sphi 0, %s149
    %s151 = sphi 0, %s149
    %s152 = sphi 0, %s151
    %s166 = sphi 0, %s152
    %s170 = sphi 0, %s170
    %s172 = sphi 0, %s170
    %s173 = sphi 0, %s172
    %s187 = sphi 0, %s173
    %s191 = sphi 0, %s191
    %s193 = sphi 0, %s191
    %s194 = sphi 0, %s193
    %s208 = sphi 0, %s194
    %s214 = sphi 0, %s216
    %s217 = sphi 0, %s214
    %s218 = sphi 0, %s217
    %s234 = sphi 0, %s218
  $region4: #{ssimae_loss.1} parent=0 // loop_header_branch
    %29 = sbr.rel (%p27) target = $region8
  $region5: #{ssimae_loss.1} parent=0 // loop_body
    %s31 = ssub.s32 %s26, 1
    %s32 = ssub.s32 %s26, 2
    %s33 = sadd.s32 %s26, 1
    %s34 = ssub.s32 %s26, %s33
    %p35 = scmp.eq.s32.totalorder %s34, 0
    %s37 = sadd.s32 %s36, 1
    %s38 = scalar_select %p35, %s36, %s37
    %p41 = pneg %p35
    %p42 = scmp.eq.s32.totalorder %s26, 1
    %p43 = por %p41, %p42
    %p44 = scmp.ne.s32.totalorder %s36, %s39
    %p45 = scmp.eq.s32.totalorder %s26, 0
    %p46 = por %p44, %p45
    %p47 = scmp.ne.s32.totalorder %s36, %s39
    %p48 = scmp.eq.s32.totalorder %s31, 1
    %p49 = por %p47, %p48
    %p50 = scmp.ne.s32.totalorder %s39, %s40
    %p51 = scmp.eq.s32.totalorder %s31, 0
    %p52 = por %p50, %p51
    %p53 = scmp.ne.s32.totalorder %s39, %s40
    %p54 = scmp.eq.s32.totalorder %s32, 1
    %p55 = por %p53, %p54
    %p57 = scmp.ne.s32.totalorder %s40, %s56
    %p58 = scmp.eq.s32.totalorder %s32, 0
    %p59 = por %p57, %p58
    %s60 = ssub.s32 %s26, %s33
    %p61 = scmp.eq.s32.totalorder %s60, 0
    %s63 = sadd.s32 %s62, 1
    %s64 = scalar_select %p61, %s62, %s63
    %p67 = pneg %p61
    %p68 = scmp.eq.s32.totalorder %s26, 1
    %p69 = por %p67, %p68
    %p70 = scmp.ne.s32.totalorder %s62, %s65
    %p71 = scmp.eq.s32.totalorder %s26, 0
    %p72 = por %p70, %p71
    %p73 = scmp.ne.s32.totalorder %s62, %s65
    %p74 = scmp.eq.s32.totalorder %s31, 1
    %p75 = por %p73, %p74
    %p76 = scmp.ne.s32.totalorder %s65, %s66
    %p77 = scmp.eq.s32.totalorder %s31, 0
    %p78 = por %p76, %p77
    %p79 = scmp.ne.s32.totalorder %s65, %s66
    %p80 = scmp.eq.s32.totalorder %s32, 1
    %p81 = por %p79, %p80
    %p83 = scmp.ne.s32.totalorder %s66, %s82
    %p84 = scmp.eq.s32.totalorder %s32, 0
    %p85 = por %p83, %p84
    %s87 = sadd.s32 %s86, 1
    %p90 = scmp.eq.s32.totalorder %s26, 1
    %p91 = scmp.ne.s32.totalorder %s86, %s88
    %p92 = scmp.eq.s32.totalorder %s26, 0
    %p93 = por %p91, %p92
    %p94 = scmp.ne.s32.totalorder %s86, %s88
    %p95 = scmp.eq.s32.totalorder %s31, 1
    %p96 = por %p94, %p95
    %p97 = scmp.ne.s32.totalorder %s88, %s89
    %p98 = scmp.eq.s32.totalorder %s31, 0
    %p99 = por %p97, %p98
    %p100 = scmp.ne.s32.totalorder %s88, %s89
    %p101 = scmp.eq.s32.totalorder %s32, 1
    %p102 = por %p100, %p101
    %p104 = scmp.ne.s32.totalorder %s89, %s103
    %p105 = scmp.eq.s32.totalorder %s32, 0
    %p106 = por %p104, %p105
    %s108 = sadd.s32 %s107, 1
    %p111 = scmp.eq.s32.totalorder %s26, 1
    %p112 = scmp.ne.s32.totalorder %s107, %s109
    %p113 = scmp.eq.s32.totalorder %s26, 0
    %p114 = por %p112, %p113
    %p115 = scmp.ne.s32.totalorder %s107, %s109
    %p116 = scmp.eq.s32.totalorder %s31, 1
    %p117 = por %p115, %p116
    %p118 = scmp.ne.s32.totalorder %s109, %s110
    %p119 = scmp.eq.s32.totalorder %s31, 0
    %p120 = por %p118, %p119
    %p121 = scmp.ne.s32.totalorder %s109, %s110
    %p122 = scmp.eq.s32.totalorder %s32, 1
    %p123 = por %p121, %p122
    %p125 = scmp.ne.s32.totalorder %s110, %s124
    %p126 = scmp.eq.s32.totalorder %s32, 0
    %p127 = por %p125, %p126
    %s129 = sadd.s32 %s128, 1
    %p132 = scmp.eq.s32.totalorder %s26, 1
    %p133 = scmp.ne.s32.totalorder %s128, %s130
    %p134 = scmp.eq.s32.totalorder %s26, 0
    %p135 = por %p133, %p134
    %p136 = scmp.ne.s32.totalorder %s128, %s130
    %p137 = scmp.eq.s32.totalorder %s31, 1
    %p138 = por %p136, %p137
    %p139 = scmp.ne.s32.totalorder %s130, %s131
    %p140 = scmp.eq.s32.totalorder %s31, 0
    %p141 = por %p139, %p140
    %p142 = scmp.ne.s32.totalorder %s130, %s131
    %p143 = scmp.eq.s32.totalorder %s32, 1
    %p144 = por %p142, %p143
    %p146 = scmp.ne.s32.totalorder %s131, %s145
    %p147 = scmp.eq.s32.totalorder %s32, 0
    %p148 = por %p146, %p147
    %s150 = sadd.s32 %s149, 1
    %p153 = scmp.eq.s32.totalorder %s26, 1
    %p154 = scmp.ne.s32.totalorder %s149, %s151
    %p155 = scmp.eq.s32.totalorder %s26, 0
    %p156 = por %p154, %p155
    %p157 = scmp.ne.s32.totalorder %s149, %s151
    %p158 = scmp.eq.s32.totalorder %s31, 1
    %p159 = por %p157, %p158
    %p160 = scmp.ne.s32.totalorder %s151, %s152
    %p161 = scmp.eq.s32.totalorder %s31, 0
    %p162 = por %p160, %p161
    %p163 = scmp.ne.s32.totalorder %s151, %s152
    %p164 = scmp.eq.s32.totalorder %s32, 1
    %p165 = por %p163, %p164
    %p167 = scmp.ne.s32.totalorder %s152, %s166
    %p168 = scmp.eq.s32.totalorder %s32, 0
    %p169 = por %p167, %p168
    %s171 = sadd.s32 %s170, 1
    %p174 = scmp.eq.s32.totalorder %s26, 1
    %p175 = scmp.ne.s32.totalorder %s170, %s172
    %p176 = scmp.eq.s32.totalorder %s26, 0
    %p177 = por %p175, %p176
    %p178 = scmp.ne.s32.totalorder %s170, %s172
    %p179 = scmp.eq.s32.totalorder %s31, 1
    %p180 = por %p178, %p179
    %p181 = scmp.ne.s32.totalorder %s172, %s173
    %p182 = scmp.eq.s32.totalorder %s31, 0
    %p183 = por %p181, %p182
    %p184 = scmp.ne.s32.totalorder %s172, %s173
    %p185 = scmp.eq.s32.totalorder %s32, 1
    %p186 = por %p184, %p185
    %p188 = scmp.ne.s32.totalorder %s173, %s187
    %p189 = scmp.eq.s32.totalorder %s32, 0
    %p190 = por %p188, %p189
    %s192 = sadd.s32 %s191, 1
    %p195 = scmp.eq.s32.totalorder %s26, 1
    %p196 = scmp.ne.s32.totalorder %s191, %s193
    %p197 = scmp.eq.s32.totalorder %s26, 0
    %p198 = por %p196, %p197
    %p199 = scmp.ne.s32.totalorder %s191, %s193
    %p200 = scmp.eq.s32.totalorder %s31, 1
    %p201 = por %p199, %p200
    %p202 = scmp.ne.s32.totalorder %s193, %s194
    %p203 = scmp.eq.s32.totalorder %s31, 0
    %p204 = por %p202, %p203
    %p205 = scmp.ne.s32.totalorder %s193, %s194
    %p206 = scmp.eq.s32.totalorder %s32, 1
    %p207 = por %p205, %p206
    %p209 = scmp.ne.s32.totalorder %s194, %s208
    %p210 = scmp.eq.s32.totalorder %s32, 0
    %p211 = por %p209, %p210
    %s212 = ssub.s32 %s26, %s33
    %p213 = scmp.eq.s32.totalorder %s212, 0
    %s215 = sadd.s32 %s214, 1
    %s216 = scalar_select %p213, %s214, %s215
    %p219 = pneg %p213
    %p220 = scmp.eq.s32.totalorder %s26, 1
    %p221 = por %p219, %p220
    %p222 = scmp.ne.s32.totalorder %s214, %s217
    %p223 = scmp.eq.s32.totalorder %s26, 0
    %p224 = por %p222, %p223
    %p225 = scmp.ne.s32.totalorder %s214, %s217
    %p226 = scmp.eq.s32.totalorder %s31, 1
    %p227 = por %p225, %p226
    %p228 = scmp.ne.s32.totalorder %s217, %s218
    %p229 = scmp.eq.s32.totalorder %s31, 0
    %p230 = por %p228, %p229
    %p231 = scmp.ne.s32.totalorder %s217, %s218
    %p232 = scmp.eq.s32.totalorder %s32, 1
    %p233 = por %p231, %p232
    %p235 = scmp.ne.s32.totalorder %s218, %s234
    %p236 = scmp.eq.s32.totalorder %s32, 0
    %p237 = por %p235, %p236
    %p238 = scmp.le.s32.totalorder 1, %s26
    %p239 = scmp.lt.s32.totalorder %s26, 3
    %p240 = pnand %p238, %p239
    %p241 = pneg %p240
    // Predicated region
    $region9: #{ssimae_loss.1} parent=5 // pred_check
      _
    $region10: #{ssimae_loss.1} parent=5 // pred_check_branch
      %243 = sbr.rel (%p240) target = $region12
    $region11: #{ssimae_loss.1} parent=5 // pred_region
      %s244 = ssub.s32 %s26, 1
      // Predicated region
      $region13: #{ssimae_loss.1} parent=11 // pred_check
        %p245 = pneg %p99
      $region14: #{ssimae_loss.1} parent=11 // pred_check_branch
        %247 = sbr.rel (%p245) target = $region16
      $region15: #{ssimae_loss.1} parent=11 // pred_region
        _
      $region16: #{ssimae_loss.1} parent=11 // pred_fallthru
        _
      // Predicated region
      $region17: #{ssimae_loss.1} parent=11 // pred_check
        %p248 = pneg %p120
      $region18: #{ssimae_loss.1} parent=11 // pred_check_branch
        %250 = sbr.rel (%p248) target = $region20
      $region19: #{ssimae_loss.1} parent=11 // pred_region
        _
      $region20: #{ssimae_loss.1} parent=11 // pred_fallthru
        _
      // Predicated region
      $region21: #{ssimae_loss.1} parent=11 // pred_check
        %p251 = pneg %p141
      $region22: #{ssimae_loss.1} parent=11 // pred_check_branch
        %253 = sbr.rel (%p251) target = $region24
      $region23: #{ssimae_loss.1} parent=11 // pred_region
        _
      $region24: #{ssimae_loss.1} parent=11 // pred_fallthru
        _
      // Predicated region
      $region25: #{ssimae_loss.1} parent=11 // pred_check
        %p254 = pneg %p162
      $region26: #{ssimae_loss.1} parent=11 // pred_check_branch
        %256 = sbr.rel (%p254) target = $region28
      $region27: #{ssimae_loss.1} parent=11 // pred_region
        _
      $region28: #{ssimae_loss.1} parent=11 // pred_fallthru
        _
      // Predicated region
      $region29: #{ssimae_loss.1} parent=11 // pred_check
        %p257 = pneg %p183
      $region30: #{ssimae_loss.1} parent=11 // pred_check_branch
        %259 = sbr.rel (%p257) target = $region32
      $region31: #{ssimae_loss.1} parent=11 // pred_region
        _
      $region32: #{ssimae_loss.1} parent=11 // pred_fallthru
        _
      // Predicated region
      $region33: #{ssimae_loss.1} parent=11 // pred_check
        %p260 = pneg %p204
      $region34: #{ssimae_loss.1} parent=11 // pred_check_branch
        %262 = sbr.rel (%p260) target = $region36
      $region35: #{ssimae_loss.1} parent=11 // pred_region
        _
      $region36: #{ssimae_loss.1} parent=11 // pred_fallthru
        _
    $region12: #{ssimae_loss.1} parent=5 // pred_fallthru
      _
    %p263 = scmp.lt.s32.totalorder %s26, 2
    // Predicated region
    $region37: #{ssimae_loss.1} parent=5 // pred_check
      %p264 = pneg %p263
    $region38: #{ssimae_loss.1} parent=5 // pred_check_branch
      %266 = sbr.rel (%p264) target = $region40
    $region39: #{ssimae_loss.1} parent=5 // pred_region
      // Predicated region
      $region41: #{ssimae_loss.1} parent=39 // pred_check
        %p267 = pneg %p46
      $region42: #{ssimae_loss.1} parent=39 // pred_check_branch
        %269 = sbr.rel (%p267) target = $region44
      $region43: #{ssimae_loss.1} parent=39 // pred_region
        %p270 = scmp.lt.s32.totalorder %s26, 1
        %s271 = scalar_select %p270, %s26, 1
        %s272 = smul.addr %s271, 4
        %s273 = smul.addr %s272, 8
        %s274 = scalar_lea.vmem %s2, %s273
      $region44: #{ssimae_loss.1} parent=39 // pred_fallthru
        _
      // Predicated region
      $region45: #{ssimae_loss.1} parent=39 // pred_check
        %p275 = pneg %p72
      $region46: #{ssimae_loss.1} parent=39 // pred_check_branch
        %277 = sbr.rel (%p275) target = $region48
      $region47: #{ssimae_loss.1} parent=39 // pred_region
        %p278 = scmp.lt.s32.totalorder %s26, 1
        %s279 = scalar_select %p278, %s26, 1
        %s280 = smul.addr %s279, 4
        %s281 = smul.addr %s280, 8
        %s282 = scalar_lea.vmem %s3, %s281
      $region48: #{ssimae_loss.1} parent=39 // pred_fallthru
        _
    $region40: #{ssimae_loss.1} parent=5 // pred_fallthru
      _
    %p283 = scmp.le.s32.totalorder 1, %s26
    %p284 = scmp.lt.s32.totalorder %s26, 3
    %p285 = pnand %p283, %p284
    %p286 = pneg %p285
    // Predicated region
    $region49: #{ssimae_loss.1} parent=5 // pred_check
      _
    $region50: #{ssimae_loss.1} parent=5 // pred_check_branch
      %288 = sbr.rel (%p285) target = $region52
    $region51: #{ssimae_loss.1} parent=5 // pred_region
      %s289 = ssub.s32 %s26, 1
      %p290 = scmp.lt.s32.totalorder %s31, 1
      %s291 = scalar_select %p290, %s31, 1
      %s292 = smul.addr %s291, 4
      %s293 = smul.addr %s292, 8
      %s294 = scalar_lea.vmem %s2, %s293
      %p295 = pneg %p52
      %p296 = pneg %p49
      %p297 = scmp.lt.s32.totalorder %s31, 1
      %s298 = scalar_select %p297, %s31, 1
      %s299 = smul.addr %s298, 4
      %s300 = smul.addr %s299, 8
      %s301 = scalar_lea.vmem %s3, %s300
      %p302 = pneg %p78
      %p303 = pneg %p75
      %p304 = pneg %p99
      %p305 = pneg %p96
      %p306 = pneg %p120
      %p307 = pneg %p117
      %p308 = pneg %p141
      %p309 = pneg %p138
      %p310 = pneg %p162
      %p311 = pneg %p159
      %p312 = pneg %p183
      %p313 = pneg %p180
      %p314 = pneg %p204
      %p315 = pneg %p201
      %p316 = pneg %p230
      %p317 = pneg %p227
      %p318 = scmp.lt.s32.totalorder %s31, 1
      %s319 = scalar_select %p318, %s31, 1
      %s320 = scalar_lea.vmem %s10, %s319
      %p321 = scmp.lt.s32.totalorder %s31, 1
      %s322 = scalar_select %p321, %s31, 1
      %s323 = smul.addr %s322, 4
      %s324 = smul.addr %s323, 8
      %s325 = scalar_lea.vmem %s2, %s324
      %p326 = scmp.lt.s32.totalorder %s31, 1
      %s327 = scalar_select %p326, %s31, 1
      %s328 = smul.addr %s327, 4
      %s329 = smul.addr %s328, 8
      %s330 = scalar_lea.vmem %s3, %s329
      %p331 = scmp.lt.s32.totalorder %s31, 1
      %s332 = scalar_select %p331, %s31, 1
      %s333 = scalar_lea.vmem %s10, %s332
      %v335 = vld [vmem:[%s325] sm:$0xff]
      %v336 = vld [vmem:[%s325 + $0x8] sm:$0xff]
      %v337 = vld [vmem:[%s325 + $0x10] sm:$0xff]
      %v338 = vld [vmem:[%s325 + $0x18] sm:$0xff]
      %v339 = vld [vmem:[%s330] sm:$0xff]
      %v340 = vld [vmem:[%s330 + $0x8] sm:$0xff]
      %v341 = vld [vmem:[%s330 + $0x10] sm:$0xff]
      %v342 = vld [vmem:[%s330 + $0x18] sm:$0xff]
      %s343 = sld [smem:[#allocation3 + %s31]]
      %v344 = vstv %s343
      %v345 = vsub.f32 %v335, %v344
      %v346 = vsub.f32 %v336, %v344
      %v347 = vsub.f32 %v337, %v344
      %v348 = vsub.f32 %v338, %v344
      %s349 = sld [smem:[#allocation4 + %s31]]
      %v350 = vstv %s349
      %v351 = vsub.f32 %v339, %v350
      %v352 = vsub.f32 %v340, %v350
      %v353 = vsub.f32 %v341, %v350
      %v354 = vsub.f32 %v342, %v350
      %v355 = vand.u32 2147483647, %v345
      %v356 = vand.u32 2147483647, %v346
      %v357 = vand.u32 2147483647, %v347
      %v358 = vand.u32 2147483647, %v348
      %vm359 = vcmask 261120
      %v360 = vsel %vm359, %v355, 0.0
      %v361 = vsel %vm359, %v356, 0.0
      %v362 = vadd.f32 %v360, %v361
      %v363 = vsel %vm359, %v357, 0.0
      %v364 = vadd.f32 %v362, %v363
      %v365 = vsel %vm359, %v358, 0.0
      %v366 = vadd.f32 %v364, %v365
      %367 = vadd.xlane.f32.xlu0 %v366
      %v368 = vpop.xlane.xlu0 %367
      %v369 = vrot.slane %v368, 4
      %v370 = vadd.f32 %v368, %v369
      %v371 = vrot.slane %v370, 2
      %v372 = vadd.f32 %v370, %v371
      %v373 = vrot.slane %v372, 1
      %v374 = vadd.f32 %v372, %v373
      %s375 = vtos %v374
      %v376 = vstv %s375
      %v377 = vrcp.pop 1024.0
      %v378 = vmul.f32 %v376, %v377
      %v379 = vand.u32 2147483647, %v351
      %v380 = vand.u32 2147483647, %v352
      %v381 = vand.u32 2147483647, %v353
      %v382 = vand.u32 2147483647, %v354
      %v383 = vsel %vm359, %v379, 0.0
      %v384 = vsel %vm359, %v380, 0.0
      %v385 = vadd.f32 %v383, %v384
      %v386 = vsel %vm359, %v381, 0.0
      %v387 = vadd.f32 %v385, %v386
      %v388 = vsel %vm359, %v382, 0.0
      %v389 = vadd.f32 %v387, %v388
      %390 = vadd.xlane.f32.xlu0 %v389
      %v391 = vpop.xlane.xlu0 %390
      %v392 = vrot.slane %v391, 4
      %v393 = vadd.f32 %v391, %v392
      %v394 = vrot.slane %v393, 2
      %v395 = vadd.f32 %v393, %v394
      %v396 = vrot.slane %v395, 1
      %v397 = vadd.f32 %v395, %v396
      %s398 = vtos %v397
      %v399 = vstv %s398
      %v400 = vmul.f32 %v399, %v377
      %v401 = vrcp.pop %v378
      %v402 = vmul.f32 1.0, %v401
      %v403 = vmul.f32 %v345, %v402
      %v404 = vmul.f32 %v346, %v402
      %v405 = vmul.f32 %v347, %v402
      %v406 = vmul.f32 %v348, %v402
      %v407 = vrcp.pop %v400
      %v408 = vmul.f32 1.0, %v407
      %v409 = vmul.f32 %v351, %v408
      %v410 = vmul.f32 %v352, %v408
      %v411 = vmul.f32 %v353, %v408
      %v412 = vmul.f32 %v354, %v408
      %v413 = vsub.f32 %v403, %v409
      %v414 = vsub.f32 %v404, %v410
      %v415 = vsub.f32 %v405, %v411
      %v416 = vsub.f32 %v406, %v412
      %v417 = vand.u32 2147483647, %v413
      %v418 = vand.u32 2147483647, %v414
      %v419 = vand.u32 2147483647, %v415
      %v420 = vand.u32 2147483647, %v416
      %v421 = vsel %vm359, %v417, 0.0
      %v422 = vsel %vm359, %v418, 0.0
      %v423 = vadd.f32 %v421, %v422
      %v424 = vsel %vm359, %v419, 0.0
      %v425 = vadd.f32 %v423, %v424
      %v426 = vsel %vm359, %v420, 0.0
      %v427 = vadd.f32 %v425, %v426
      %428 = vadd.xlane.f32.xlu0 %v427
      %v429 = vpop.xlane.xlu0 %428
      %v430 = vrot.slane %v429, 4
      %v431 = vadd.f32 %v429, %v430
      %v432 = vrot.slane %v431, 2
      %v433 = vadd.f32 %v431, %v432
      %v434 = vrot.slane %v433, 1
      %v435 = vadd.f32 %v433, %v434
      %s436 = vtos %v435
      %v437 = vstv %s436
      %v438 = vmul.f32 %v437, %v377
      %v439 = vmul.f32 %v438, 0.5
      %448 = vrot.lane.b32.xlu0 %v403, 126
      %v449 = vpop.permute.xlu0 %448
      %450 = vrot.lane.b32.xlu0 %v404, 126
      %v451 = vpop.permute.xlu0 %450
      %452 = vrot.lane.b32.xlu0 %v405, 126
      %v453 = vpop.permute.xlu0 %452
      %454 = vrot.lane.b32.xlu0 %v406, 126
      %v455 = vpop.permute.xlu0 %454
      %456 = vrot.lane.b32.xlu0 %v409, 126
      %v457 = vpop.permute.xlu0 %456
      %458 = vrot.lane.b32.xlu0 %v410, 126
      %v459 = vpop.permute.xlu0 %458
      %460 = vrot.lane.b32.xlu0 %v411, 126
      %v461 = vpop.permute.xlu0 %460
      %462 = vrot.lane.b32.xlu0 %v412, 126
      %v463 = vpop.permute.xlu0 %462
      %v472 = vsub.f32 %v403, %v449
      %v473 = vsub.f32 %v404, %v451
      %v474 = vsub.f32 %v405, %v453
      %v475 = vsub.f32 %v406, %v455
      %v476 = vsub.f32 %v409, %v457
      %v477 = vsub.f32 %v410, %v459
      %v478 = vsub.f32 %v411, %v461
      %v479 = vsub.f32 %v412, %v463
      %v480 = vmul.f32 %v472, 3.0
      %v481 = vmul.f32 %v473, 3.0
      %v482 = vmul.f32 %v474, 3.0
      %v483 = vmul.f32 %v475, 3.0
      %v484 = vmul.f32 %v476, 3.0
      %v485 = vmul.f32 %v477, 3.0
      %v486 = vmul.f32 %v478, 3.0
      %v487 = vmul.f32 %v479, 3.0
      %v488 = vmul.f32 %v472, 10.0
      %v489 = vmul.f32 %v473, 10.0
      %v490 = vmul.f32 %v474, 10.0
      %v491 = vmul.f32 %v475, 10.0
      %v492 = vmul.f32 %v476, 10.0
      %v493 = vmul.f32 %v477, 10.0
      %v494 = vmul.f32 %v478, 10.0
      %v495 = vmul.f32 %v479, 10.0
      %vm504 = vcmask 1046528
      %v505 = vrot.slane %v488, 1
      %v506 = vrot.slane %v489, 1
      %v507 = vsel %vm504, %v505, %v506
      %v508 = vrot.slane %v490, 1
      %v509 = vsel %vm504, %v506, %v508
      %v510 = vrot.slane %v491, 1
      %v511 = vsel %vm504, %v508, %v510
      %v512 = vrot.slane %v492, 1
      %v513 = vsel %vm504, %v510, %v512
      %v514 = vrot.slane %v493, 1
      %v515 = vsel %vm504, %v512, %v514
      %v516 = vrot.slane %v494, 1
      %v517 = vsel %vm504, %v514, %v516
      %v518 = vrot.slane %v495, 1
      %v519 = vsel %vm504, %v516, %v518
      %v528 = vadd.f32 %v480, %v507
      %v529 = vadd.f32 %v481, %v509
      %v530 = vadd.f32 %v482, %v511
      %v531 = vadd.f32 %v483, %v513
      %v532 = vadd.f32 %v484, %v515
      %v533 = vadd.f32 %v485, %v517
      %v534 = vadd.f32 %v486, %v519
      %v535 = vadd.f32 %v487, %v518
      %vm544 = vcmask 1045504
      %v545 = vrot.slane %v480, 2
      %v546 = vrot.slane %v481, 2
      %v547 = vsel %vm544, %v545, %v546
      %v548 = vrot.slane %v482, 2
      %v549 = vsel %vm544, %v546, %v548
      %v550 = vrot.slane %v483, 2
      %v551 = vsel %vm544, %v548, %v550
      %v552 = vrot.slane %v484, 2
      %v553 = vsel %vm544, %v550, %v552
      %v554 = vrot.slane %v485, 2
      %v555 = vsel %vm544, %v552, %v554
      %v556 = vrot.slane %v486, 2
      %v557 = vsel %vm544, %v554, %v556
      %v558 = vrot.slane %v487, 2
      %v559 = vsel %vm544, %v556, %v558
      %v568 = vadd.f32 %v528, %v547
      %v569 = vadd.f32 %v529, %v549
      %v570 = vadd.f32 %v530, %v551
      %v571 = vadd.f32 %v531, %v553
      %v572 = vadd.f32 %v532, %v555
      %v573 = vadd.f32 %v533, %v557
      %v574 = vadd.f32 %v534, %v559
      %v575 = vadd.f32 %v535, %v558
      %v576 = vmul.f32 %v403, 3.0
      %v577 = vmul.f32 %v404, 3.0
      %v578 = vmul.f32 %v405, 3.0
      %v579 = vmul.f32 %v406, 3.0
      %v580 = vmul.f32 %v409, 3.0
      %v581 = vmul.f32 %v410, 3.0
      %v582 = vmul.f32 %v411, 3.0
      %v583 = vmul.f32 %v412, 3.0
      %v584 = vmul.f32 %v403, 10.0
      %v585 = vmul.f32 %v404, 10.0
      %v586 = vmul.f32 %v405, 10.0
      %v587 = vmul.f32 %v406, 10.0
      %v588 = vmul.f32 %v409, 10.0
      %v589 = vmul.f32 %v410, 10.0
      %v590 = vmul.f32 %v411, 10.0
      %v591 = vmul.f32 %v412, 10.0
      %600 = vrot.lane.b32.xlu0 %v584, 127
      %v601 = vpop.permute.xlu0 %600
      %602 = vrot.lane.b32.xlu0 %v585, 127
      %v603 = vpop.permute.xlu0 %602
      %604 = vrot.lane.b32.xlu0 %v586, 127
      %v605 = vpop.permute.xlu0 %604
      %606 = vrot.lane.b32.xlu0 %v587, 127
      %v607 = vpop.permute.xlu0 %606
      %608 = vrot.lane.b32.xlu0 %v588, 127
      %v609 = vpop.permute.xlu0 %608
      %610 = vrot.lane.b32.xlu0 %v589, 127
      %v611 = vpop.permute.xlu0 %610
      %612 = vrot.lane.b32.xlu0 %v590, 127
      %v613 = vpop.permute.xlu0 %612
      %614 = vrot.lane.b32.xlu0 %v591, 127
      %v615 = vpop.permute.xlu0 %614
      %v624 = vadd.f32 %v576, %v601
      %v625 = vadd.f32 %v577, %v603
      %v626 = vadd.f32 %v578, %v605
      %v627 = vadd.f32 %v579, %v607
      %v628 = vadd.f32 %v580, %v609
      %v629 = vadd.f32 %v581, %v611
      %v630 = vadd.f32 %v582, %v613
      %v631 = vadd.f32 %v583, %v615
      %640 = vrot.lane.b32.xlu0 %v576, 126
      %v641 = vpop.permute.xlu0 %640
      %642 = vrot.lane.b32.xlu0 %v577, 126
      %v643 = vpop.permute.xlu0 %642
      %644 = vrot.lane.b32.xlu0 %v578, 126
      %v645 = vpop.permute.xlu0 %644
      %646 = vrot.lane.b32.xlu0 %v579, 126
      %v647 = vpop.permute.xlu0 %646
      %648 = vrot.lane.b32.xlu0 %v580, 126
      %v649 = vpop.permute.xlu0 %648
      %650 = vrot.lane.b32.xlu0 %v581, 126
      %v651 = vpop.permute.xlu0 %650
      %652 = vrot.lane.b32.xlu0 %v582, 126
      %v653 = vpop.permute.xlu0 %652
      %654 = vrot.lane.b32.xlu0 %v583, 126
      %v655 = vpop.permute.xlu0 %654
      %v664 = vadd.f32 %v624, %v641
      %v665 = vadd.f32 %v625, %v643
      %v666 = vadd.f32 %v626, %v645
      %v667 = vadd.f32 %v627, %v647
      %v668 = vadd.f32 %v628, %v649
      %v669 = vadd.f32 %v629, %v651
      %v670 = vadd.f32 %v630, %v653
      %v671 = vadd.f32 %v631, %v655
      %v680 = vrot.slane %v664, 2
      %v681 = vrot.slane %v665, 2
      %v682 = vsel %vm544, %v680, %v681
      %v683 = vrot.slane %v666, 2
      %v684 = vsel %vm544, %v681, %v683
      %v685 = vrot.slane %v667, 2
      %v686 = vsel %vm544, %v683, %v685
      %v687 = vrot.slane %v668, 2
      %v688 = vsel %vm544, %v685, %v687
      %v689 = vrot.slane %v669, 2
      %v690 = vsel %vm544, %v687, %v689
      %v691 = vrot.slane %v670, 2
      %v692 = vsel %vm544, %v689, %v691
      %v693 = vrot.slane %v671, 2
      %v694 = vsel %vm544, %v691, %v693
      %v703 = vsub.f32 %v664, %v682
      %v704 = vsub.f32 %v665, %v684
      %v705 = vsub.f32 %v666, %v686
      %v706 = vsub.f32 %v667, %v688
      %v707 = vsub.f32 %v668, %v690
      %v708 = vsub.f32 %v669, %v692
      %v709 = vsub.f32 %v670, %v694
      %v710 = vsub.f32 %v671, %v693
      %v711 = vmul.f32 %v568, %v568
      %v712 = vmul.f32 %v569, %v569
      %v713 = vmul.f32 %v570, %v570
      %v714 = vmul.f32 %v571, %v571
      %v715 = vmul.f32 %v572, %v572
      %v716 = vmul.f32 %v573, %v573
      %v717 = vmul.f32 %v574, %v574
      %v718 = vmul.f32 %v575, %v575
      %v719 = vmul.f32 %v703, %v703
      %v720 = vmul.f32 %v704, %v704
      %v721 = vmul.f32 %v705, %v705
      %v722 = vmul.f32 %v706, %v706
      %v723 = vmul.f32 %v707, %v707
      %v724 = vmul.f32 %v708, %v708
      %v725 = vmul.f32 %v709, %v709
      %v726 = vmul.f32 %v710, %v710
      %v727 = vadd.f32 %v711, %v719
      %v728 = vadd.f32 %v712, %v720
      %v729 = vadd.f32 %v713, %v721
      %v730 = vadd.f32 %v714, %v722
      %v731 = vadd.f32 %v715, %v723
      %v732 = vadd.f32 %v716, %v724
      %v733 = vadd.f32 %v717, %v725
      %v734 = vadd.f32 %v718, %v726
      %v735 = vrsqrt.pop %v727
      %v736 = vmul.f32 %v727, %v735
      %vm737 = vcmp.eq.f32.partialorder %v727, inf
      %v738 = vsel %vm737, %v727, %v736
      %vm739 = vcmp.eq.f32.partialorder %v727, 0.0
      %v740 = vand.u32 %v727, 2147483648
      %v741 = vsel %vm739, %v740, %v738
      %v742 = vrsqrt.pop %v728
      %v743 = vmul.f32 %v728, %v742
      %vm744 = vcmp.eq.f32.partialorder %v728, inf
      %v745 = vsel %vm744, %v728, %v743
      %vm746 = vcmp.eq.f32.partialorder %v728, 0.0
      %v747 = vand.u32 %v728, 2147483648
      %v748 = vsel %vm746, %v747, %v745
      %v749 = vrsqrt.pop %v729
      %v750 = vmul.f32 %v729, %v749
      %vm751 = vcmp.eq.f32.partialorder %v729, inf
      %v752 = vsel %vm751, %v729, %v750
      %vm753 = vcmp.eq.f32.partialorder %v729, 0.0
      %v754 = vand.u32 %v729, 2147483648
      %v755 = vsel %vm753, %v754, %v752
      %v756 = vrsqrt.pop %v730
      %v757 = vmul.f32 %v730, %v756
      %vm758 = vcmp.eq.f32.partialorder %v730, inf
      %v759 = vsel %vm758, %v730, %v757
      %vm760 = vcmp.eq.f32.partialorder %v730, 0.0
      %v761 = vand.u32 %v730, 2147483648
      %v762 = vsel %vm760, %v761, %v759
      %v763 = vrsqrt.pop %v731
      %v764 = vmul.f32 %v731, %v763
      %vm765 = vcmp.eq.f32.partialorder %v731, inf
      %v766 = vsel %vm765, %v731, %v764
      %vm767 = vcmp.eq.f32.partialorder %v731, 0.0
      %v768 = vand.u32 %v731, 2147483648
      %v769 = vsel %vm767, %v768, %v766
      %v770 = vrsqrt.pop %v732
      %v771 = vmul.f32 %v732, %v770
      %vm772 = vcmp.eq.f32.partialorder %v732, inf
      %v773 = vsel %vm772, %v732, %v771
      %vm774 = vcmp.eq.f32.partialorder %v732, 0.0
      %v775 = vand.u32 %v732, 2147483648
      %v776 = vsel %vm774, %v775, %v773
      %v777 = vrsqrt.pop %v733
      %v778 = vmul.f32 %v733, %v777
      %vm779 = vcmp.eq.f32.partialorder %v733, inf
      %v780 = vsel %vm779, %v733, %v778
      %vm781 = vcmp.eq.f32.partialorder %v733, 0.0
      %v782 = vand.u32 %v733, 2147483648
      %v783 = vsel %vm781, %v782, %v780
      %v784 = vrsqrt.pop %v734
      %v785 = vmul.f32 %v734, %v784
      %vm786 = vcmp.eq.f32.partialorder %v734, inf
      %v787 = vsel %vm786, %v734, %v785
      %vm788 = vcmp.eq.f32.partialorder %v734, 0.0
      %v789 = vand.u32 %v734, 2147483648
      %v790 = vsel %vm788, %v789, %v787
      %v791 = vsub.f32 %v741, %v769
      %v792 = vsub.f32 %v748, %v776
      %v793 = vsub.f32 %v755, %v783
      %v794 = vsub.f32 %v762, %v790
      %v795 = vand.u32 2147483647, %v791
      %v796 = vand.u32 2147483647, %v792
      %v797 = vand.u32 2147483647, %v793
      %v798 = vand.u32 2147483647, %v794
      %vm799 = vcmask 244736
      %v800 = vsel %vm799, %v795, 0.0
      %v801 = vsel %vm799, %v796, 0.0
      %v802 = vadd.f32 %v800, %v801
      %v803 = vsel %vm799, %v797, 0.0
      %v804 = vadd.f32 %v802, %v803
      %vm805 = vcmask 242688
      %v806 = vsel %vm805, %v798, 0.0
      %v807 = vadd.f32 %v804, %v806
      %808 = vadd.xlane.f32.xlu0 %v807
      %v809 = vpop.xlane.xlu0 %808
      %v810 = vrot.slane %v809, 4
      %v811 = vadd.f32 %v809, %v810
      %v812 = vrot.slane %v811, 2
      %v813 = vadd.f32 %v811, %v812
      %v814 = vrot.slane %v813, 1
      %v815 = vadd.f32 %v813, %v814
      %s816 = vtos %v815
      %v817 = vstv %s816
      %v818 = vrcp.pop 900.0
      %v819 = vmul.f32 %v817, %v818
      %v820 = vld [vmem:[%s4] sm:$0xf]
      %v821 = vld [vmem:[%s4 + $0x4] sm:$0xf]
      %v822 = vld [vmem:[%s5] sm:$0xf]
      %v823 = vld [vmem:[%s5 + $0x4] sm:$0xf]
      %v824 = vld [vmem:[%s5 + $0x8] sm:$0xf]
      %v825 = vld [vmem:[%s5 + $0xc] sm:$0xf]
      %v826 = vpack.c.bf16 %v404, %v403
      %v827 = vpack.c.bf16 %v406, %v405
      %v828 = vpack.c.bf16 %v410, %v409
      %v829 = vpack.c.bf16 %v412, %v411
      %v834 = vunpack.c.l.b16 %v822
      %v835 = vunpack.c.l.b16 %v823
      %v836 = vunpack.c.l.b16 %v824
      %v837 = vunpack.c.l.b16 %v825
      %v838 = vpack.c.b16 %v835, %v834
      %v839 = vpack.c.b16 %v837, %v836
      %v843 = vsel %vm359, %v826, 0
      %v846 = vsel %vm359, %v827, 0
      %v849 = vsel %vm359, %v828, 0
      %v852 = vsel %vm359, %v829, 0
      %854 = vmatprep.subr.bf16.mxu0 0
      %855 = vmatpush1.bf16.msra.mxu0 0
      %856 = vmatprep.subr.bf16.mxu0 0
      %857 = vmatpush1.bf16.msra.mxu0 0
      %858 = vmatprep.subr.bf16.mxu0 0
      %859 = vmatpush1.bf16.msra.mxu0 0
      %860 = vmatprep.subr.bf16.mxu0 0
      %861 = vmatpush1.bf16.msra.mxu0 0
      %862 = vmatprep.subr.bf16.mxu0 0
      %863 = vmatpush1.bf16.msra.mxu0 0
      %864 = vmatprep.subr.bf16.mxu0 0
      %865 = vmatpush1.bf16.msra.mxu0 0
      %866 = vmatprep.subr.bf16.mxu0 0
      %867 = vmatpush1.bf16.msra.mxu0 %v839
      %868 = vmatprep.subr.bf16.mxu0 0
      %869 = vmatpush1.bf16.msra.mxu0 %v838
      %870 = vmatprep.subr.bf16.mxu0 0
      %871 = vmatpush2.bf16.msra.mxu0 0
      %872 = vmatprep.subr.bf16.mxu0 0
      %873 = vmatpush2.bf16.msra.mxu0 0
      %874 = vmatprep.subr.bf16.mxu0 0
      %875 = vmatpush2.bf16.msra.mxu0 0
      %876 = vmatprep.subr.bf16.mxu0 0
      %877 = vmatpush2.bf16.msra.mxu0 0
      %878 = vmatprep.subr.bf16.mxu0 0
      %879 = vmatpush2.bf16.msra.mxu0 0
      %880 = vmatprep.subr.bf16.mxu0 0
      %881 = vmatpush2.bf16.msra.mxu0 0
      %882 = vmatprep.subr.bf16.mxu0 0
      %883 = vmatpush2.bf16.msra.mxu0 0
      %884 = vmatprep.subr.bf16.mxu0 0
      %885 = vmatpush2.bf16.msra.mxu0 0
      %886 = vmatprep.mubr.bf16.mxu0 0
      %887 = vmatmul.mubr.bf16.gmra.mxu0 %v843
      %v888 = vpop.f32.mrf.mxu0
      %v889 = vadd.f32 0.0, %v888
      %v890 = vpop.f32.mrf.mxu0
      %v891 = vpop.f32.mrf.mxu0
      %v892 = vadd.f32 0.0, %v891
      %v893 = vpop.f32.mrf.mxu0
      %894 = vmatprep.mubr.bf16.mxu0 0
      %895 = vmatmul.mubr.bf16.gmra.mxu0 %v846
      %v896 = vpop.f32.mrf.mxu0
      %v897 = vadd.f32 0.0, %v896
      %v898 = vpop.f32.mrf.mxu0
      %v899 = vpop.f32.mrf.mxu0
      %v900 = vadd.f32 0.0, %v899
      %v901 = vpop.f32.mrf.mxu0
      %902 = vmatprep.mubr.bf16.mxu0 0
      %903 = vmatmul.mubr.bf16.gmra.mxu0 %v849
      %v904 = vpop.f32.mrf.mxu0
      %v905 = vadd.f32 0.0, %v904
      %v906 = vpop.f32.mrf.mxu0
      %v907 = vpop.f32.mrf.mxu0
      %v908 = vadd.f32 0.0, %v907
      %v909 = vpop.f32.mrf.mxu0
      %910 = vmatprep.mubr.bf16.mxu0 0
      %911 = vmatmul.mubr.bf16.gmra.mxu0 %v852
      %v912 = vpop.f32.mrf.mxu0
      %v913 = vadd.f32 0.0, %v912
      %v914 = vpop.f32.mrf.mxu0
      %v915 = vpop.f32.mrf.mxu0
      %v916 = vadd.f32 0.0, %v915
      %v917 = vpop.f32.mrf.mxu0
      %918 = vdwg.mxu0
      %923 = vrot.lane.b32.xlu0 %v905, 16
      %v924 = vpop.permute.xlu0 %923
      %925 = vrot.lane.b32.xlu0 %v908, 16
      %v926 = vpop.permute.xlu0 %925
      %927 = vrot.lane.b32.xlu0 %v913, 16
      %v928 = vpop.permute.xlu0 %927
      %929 = vrot.lane.b32.xlu0 %v916, 16
      %v930 = vpop.permute.xlu0 %929
      %vm935 = vcmask 130048
      %v936 = vsel %vm935, %v889, %v924
      %v937 = vsel %vm935, %v892, %v926
      %v938 = vsel %vm935, %v897, %v928
      %v939 = vsel %vm935, %v900, %v930
      %v940 = vpack.c.bf16 %v937, %v936
      %v941 = vpack.c.bf16 %v939, %v938
      %v944 = vunpack.c.l.b16 %v820
      %v945 = vunpack.c.l.b16 %v821
      %v946 = vpack.c.b16 %v945, %v944
      %v948 = vsel %vm359, %v946, 0
      %950 = vmatprep.subr.bf16.mxu0 0
      %951 = vmatpush1.bf16.msra.mxu0 0
      %952 = vmatprep.subr.bf16.mxu0 0
      %953 = vmatpush1.bf16.msra.mxu0 0
      %954 = vmatprep.subr.bf16.mxu0 0
      %955 = vmatpush1.bf16.msra.mxu0 0
      %956 = vmatprep.subr.bf16.mxu0 0
      %957 = vmatpush1.bf16.msra.mxu0 0
      %958 = vmatprep.subr.bf16.mxu0 0
      %959 = vmatpush1.bf16.msra.mxu0 0
      %960 = vmatprep.subr.bf16.mxu0 0
      %961 = vmatpush1.bf16.msra.mxu0 0
      %962 = vmatprep.subr.bf16.mxu0 0
      %963 = vmatpush1.bf16.msra.mxu0 %v941
      %964 = vmatprep.subr.bf16.mxu0 0
      %965 = vmatpush1.bf16.msra.mxu0 %v940
      %966 = vmatprep.subr.bf16.mxu0 0
      %967 = vmatpush2.bf16.msra.mxu0 0
      %968 = vmatprep.subr.bf16.mxu0 0
      %969 = vmatpush2.bf16.msra.mxu0 0
      %970 = vmatprep.subr.bf16.mxu0 0
      %971 = vmatpush2.bf16.msra.mxu0 0
      %972 = vmatprep.subr.bf16.mxu0 0
      %973 = vmatpush2.bf16.msra.mxu0 0
      %974 = vmatprep.subr.bf16.mxu0 0
      %975 = vmatpush2.bf16.msra.mxu0 0
      %976 = vmatprep.subr.bf16.mxu0 0
      %977 = vmatpush2.bf16.msra.mxu0 0
      %978 = vmatprep.subr.bf16.mxu0 0
      %979 = vmatpush2.bf16.msra.mxu0 0
      %980 = vmatprep.subr.bf16.mxu0 0
      %981 = vmatpush2.bf16.msra.mxu0 0
      %982 = vmatprep.mubr.bf16.mxu0 0
      %983 = vmatmul.mubr.bf16.gmra.mxu0 %v948
      %v984 = vpop.f32.mrf.mxu0
      %v985 = vadd.f32 0.0, %v984
      %v986 = vpop.f32.mrf.mxu0
      %v987 = vpop.f32.mrf.mxu0
      %v988 = vadd.f32 0.0, %v987
      %v989 = vpop.f32.mrf.mxu0
      %990 = vdwg.mxu0
      %993 = vrot.lane.b32.xlu0 %v985, 112
      %v994 = vpop.permute.xlu0 %993
      %995 = vrot.lane.b32.xlu0 %v988, 112
      %v996 = vpop.permute.xlu0 %995
      %999 = vrot.lane.b32.xlu0 %v985, 126
      %v1000 = vpop.permute.xlu0 %999
      %1001 = vrot.lane.b32.xlu0 %v988, 126
      %v1002 = vpop.permute.xlu0 %1001
      %1003 = vrot.lane.b32.xlu0 %v994, 126
      %v1004 = vpop.permute.xlu0 %1003
      %1005 = vrot.lane.b32.xlu0 %v996, 126
      %v1006 = vpop.permute.xlu0 %1005
      %v1011 = vsub.f32 %v985, %v1000
      %v1012 = vsub.f32 %v988, %v1002
      %v1013 = vsub.f32 %v994, %v1004
      %v1014 = vsub.f32 %v996, %v1006
      %v1015 = vmul.f32 %v1011, 3.0
      %v1016 = vmul.f32 %v1012, 3.0
      %v1017 = vmul.f32 %v1013, 3.0
      %v1018 = vmul.f32 %v1014, 3.0
      %v1019 = vmul.f32 %v1011, 10.0
      %v1020 = vmul.f32 %v1012, 10.0
      %v1021 = vmul.f32 %v1013, 10.0
      %v1022 = vmul.f32 %v1014, 10.0
      %v1027 = vrot.slane %v1019, 1
      %v1028 = vrot.slane %v1020, 1
      %v1029 = vsel %vm504, %v1027, %v1028
      %v1030 = vrot.slane %v1021, 1
      %v1031 = vsel %vm504, %v1028, %v1030
      %v1032 = vrot.slane %v1022, 1
      %v1033 = vsel %vm504, %v1030, %v1032
      %v1038 = vadd.f32 %v1015, %v1029
      %v1039 = vadd.f32 %v1016, %v1031
      %v1040 = vadd.f32 %v1017, %v1033
      %v1041 = vadd.f32 %v1018, %v1032
      %v1046 = vrot.slane %v1015, 2
      %v1047 = vrot.slane %v1016, 2
      %v1048 = vsel %vm544, %v1046, %v1047
      %v1049 = vrot.slane %v1017, 2
      %v1050 = vsel %vm544, %v1047, %v1049
      %v1051 = vrot.slane %v1018, 2
      %v1052 = vsel %vm544, %v1049, %v1051
      %v1057 = vadd.f32 %v1038, %v1048
      %v1058 = vadd.f32 %v1039, %v1050
      %v1059 = vadd.f32 %v1040, %v1052
      %v1060 = vadd.f32 %v1041, %v1051
      %v1061 = vmul.f32 %v985, 3.0
      %v1062 = vmul.f32 %v988, 3.0
      %v1063 = vmul.f32 %v994, 3.0
      %v1064 = vmul.f32 %v996, 3.0
      %v1065 = vmul.f32 %v985, 10.0
      %v1066 = vmul.f32 %v988, 10.0
      %v1067 = vmul.f32 %v994, 10.0
      %v1068 = vmul.f32 %v996, 10.0
      %1073 = vrot.lane.b32.xlu0 %v1065, 127
      %v1074 = vpop.permute.xlu0 %1073
      %1075 = vrot.lane.b32.xlu0 %v1066, 127
      %v1076 = vpop.permute.xlu0 %1075
      %1077 = vrot.lane.b32.xlu0 %v1067, 127
      %v1078 = vpop.permute.xlu0 %1077
      %1079 = vrot.lane.b32.xlu0 %v1068, 127
      %v1080 = vpop.permute.xlu0 %1079
      %v1085 = vadd.f32 %v1061, %v1074
      %v1086 = vadd.f32 %v1062, %v1076
      %v1087 = vadd.f32 %v1063, %v1078
      %v1088 = vadd.f32 %v1064, %v1080
      %1093 = vrot.lane.b32.xlu0 %v1061, 126
      %v1094 = vpop.permute.xlu0 %1093
      %1095 = vrot.lane.b32.xlu0 %v1062, 126
      %v1096 = vpop.permute.xlu0 %1095
      %1097 = vrot.lane.b32.xlu0 %v1063, 126
      %v1098 = vpop.permute.xlu0 %1097
      %1099 = vrot.lane.b32.xlu0 %v1064, 126
      %v1100 = vpop.permute.xlu0 %1099
      %v1105 = vadd.f32 %v1085, %v1094
      %v1106 = vadd.f32 %v1086, %v1096
      %v1107 = vadd.f32 %v1087, %v1098
      %v1108 = vadd.f32 %v1088, %v1100
      %v1113 = vrot.slane %v1105, 2
      %v1114 = vrot.slane %v1106, 2
      %v1115 = vsel %vm544, %v1113, %v1114
      %v1116 = vrot.slane %v1107, 2
      %v1117 = vsel %vm544, %v1114, %v1116
      %v1118 = vrot.slane %v1108, 2
      %v1119 = vsel %vm544, %v1116, %v1118
      %v1124 = vsub.f32 %v1105, %v1115
      %v1125 = vsub.f32 %v1106, %v1117
      %v1126 = vsub.f32 %v1107, %v1119
      %v1127 = vsub.f32 %v1108, %v1118
      %v1128 = vmul.f32 %v1057, %v1057
      %v1129 = vmul.f32 %v1058, %v1058
      %v1130 = vmul.f32 %v1059, %v1059
      %v1131 = vmul.f32 %v1060, %v1060
      %v1132 = vmul.f32 %v1124, %v1124
      %v1133 = vmul.f32 %v1125, %v1125
      %v1134 = vmul.f32 %v1126, %v1126
      %v1135 = vmul.f32 %v1127, %v1127
      %v1136 = vadd.f32 %v1128, %v1132
      %v1137 = vadd.f32 %v1129, %v1133
      %v1138 = vadd.f32 %v1130, %v1134
      %v1139 = vadd.f32 %v1131, %v1135
      %v1140 = vrsqrt.pop %v1136
      %v1141 = vmul.f32 %v1136, %v1140
      %vm1142 = vcmp.eq.f32.partialorder %v1136, inf
      %v1143 = vsel %vm1142, %v1136, %v1141
      %vm1144 = vcmp.eq.f32.partialorder %v1136, 0.0
      %v1145 = vand.u32 %v1136, 2147483648
      %v1146 = vsel %vm1144, %v1145, %v1143
      %v1147 = vrsqrt.pop %v1137
      %v1148 = vmul.f32 %v1137, %v1147
      %vm1149 = vcmp.eq.f32.partialorder %v1137, inf
      %v1150 = vsel %vm1149, %v1137, %v1148
      %vm1151 = vcmp.eq.f32.partialorder %v1137, 0.0
      %v1152 = vand.u32 %v1137, 2147483648
      %v1153 = vsel %vm1151, %v1152, %v1150
      %v1154 = vrsqrt.pop %v1138
      %v1155 = vmul.f32 %v1138, %v1154
      %vm1156 = vcmp.eq.f32.partialorder %v1138, inf
      %v1157 = vsel %vm1156, %v1138, %v1155
      %vm1158 = vcmp.eq.f32.partialorder %v1138, 0.0
      %v1159 = vand.u32 %v1138, 2147483648
      %v1160 = vsel %vm1158, %v1159, %v1157
      %v1161 = vrsqrt.pop %v1139
      %v1162 = vmul.f32 %v1139, %v1161
      %vm1163 = vcmp.eq.f32.partialorder %v1139, inf
      %v1164 = vsel %vm1163, %v1139, %v1162
      %vm1165 = vcmp.eq.f32.partialorder %v1139, 0.0
      %v1166 = vand.u32 %v1139, 2147483648
      %v1167 = vsel %vm1165, %v1166, %v1164
      %v1168 = vsub.f32 %v1146, %v1160
      %v1169 = vsub.f32 %v1153, %v1167
      %v1170 = vand.u32 2147483647, %v1168
      %v1171 = vand.u32 2147483647, %v1169
      %vm1172 = vcmask 113664
      %v1173 = vsel %vm1172, %v1170, 0.0
      %vm1174 = vcmask 111616
      %v1175 = vsel %vm1174, %v1171, 0.0
      %v1176 = vadd.f32 %v1173, %v1175
      %1177 = vadd.xlane.f32.xlu0 %v1176
      %v1178 = vpop.xlane.xlu0 %1177
      %v1179 = vrot.slane %v1178, 4
      %v1180 = vadd.f32 %v1178, %v1179
      %v1181 = vrot.slane %v1180, 2
      %v1182 = vadd.f32 %v1180, %v1181
      %v1183 = vrot.slane %v1182, 1
      %v1184 = vadd.f32 %v1182, %v1183
      %s1185 = vtos %v1184
      %v1186 = vstv %s1185
      %v1187 = vrcp.pop 196.0
      %v1188 = vmul.f32 %v1186, %v1187
      %v1189 = vadd.f32 %v819, %v1188
      %v1190 = vld [vmem:[%s6] sm:$0xf]
      %v1191 = vld [vmem:[%s7] sm:$0xf]
      %v1192 = vld [vmem:[%s7 + $0x4] sm:$0xf]
      %v1193 = vpack.c.bf16 %v988, %v985
      %v1194 = vpack.c.bf16 %v996, %v994
      %v1197 = vunpack.c.l.b16 %v1191
      %v1198 = vunpack.c.l.b16 %v1192
      %v1199 = vpack.c.b16 %v1198, %v1197
      %v1202 = vsel %vm935, %v1193, 0
      %v1205 = vsel %vm935, %v1194, 0
      %1207 = vmatprep.subr.bf16.mxu0 0
      %1208 = vmatpush1.bf16.msra.mxu0 0
      %1209 = vmatprep.subr.bf16.mxu0 0
      %1210 = vmatpush1.bf16.msra.mxu0 0
      %1211 = vmatprep.subr.bf16.mxu0 0
      %1212 = vmatpush1.bf16.msra.mxu0 0
      %1213 = vmatprep.subr.bf16.mxu0 0
      %1214 = vmatpush1.bf16.msra.mxu0 0
      %1215 = vmatprep.subr.bf16.mxu0 0
      %1216 = vmatpush1.bf16.msra.mxu0 0
      %1217 = vmatprep.subr.bf16.mxu0 0
      %1218 = vmatpush1.bf16.msra.mxu0 0
      %1219 = vmatprep.subr.bf16.mxu0 0
      %1220 = vmatpush1.bf16.msra.mxu0 0
      %1221 = vmatprep.subr.bf16.mxu0 0
      %1222 = vmatpush1.bf16.msra.mxu0 %v1199
      %1223 = vmatprep.subr.bf16.mxu0 0
      %1224 = vmatpush2.bf16.msra.mxu0 0
      %1225 = vmatprep.subr.bf16.mxu0 0
      %1226 = vmatpush2.bf16.msra.mxu0 0
      %1227 = vmatprep.subr.bf16.mxu0 0
      %1228 = vmatpush2.bf16.msra.mxu0 0
      %1229 = vmatprep.subr.bf16.mxu0 0
      %1230 = vmatpush2.bf16.msra.mxu0 0
      %1231 = vmatprep.subr.bf16.mxu0 0
      %1232 = vmatpush2.bf16.msra.mxu0 0
      %1233 = vmatprep.subr.bf16.mxu0 0
      %1234 = vmatpush2.bf16.msra.mxu0 0
      %1235 = vmatprep.subr.bf16.mxu0 0
      %1236 = vmatpush2.bf16.msra.mxu0 0
      %1237 = vmatprep.subr.bf16.mxu0 0
      %1238 = vmatpush2.bf16.msra.mxu0 0
      %1239 = vmatprep.mubr.bf16.mxu0 0
      %1240 = vmatmul.mubr.bf16.gmra.mxu0 %v1202
      %v1241 = vpop.f32.mrf.mxu0
      %v1242 = vadd.f32 0.0, %v1241
      %v1243 = vpop.f32.mrf.mxu0
      %v1244 = vpop.f32.mrf.mxu0
      %v1245 = vadd.f32 0.0, %v1244
      %v1246 = vpop.f32.mrf.mxu0
      %1247 = vmatprep.mubr.bf16.mxu0 0
      %1248 = vmatmul.mubr.bf16.gmra.mxu0 %v1205
      %v1249 = vpop.f32.mrf.mxu0
      %v1250 = vadd.f32 0.0, %v1249
      %v1251 = vpop.f32.mrf.mxu0
      %v1252 = vpop.f32.mrf.mxu0
      %v1253 = vadd.f32 0.0, %v1252
      %v1254 = vpop.f32.mrf.mxu0
      %1255 = vdwg.mxu0
      %1258 = vrot.lane.b32.xlu0 %v1250, 8
      %v1259 = vpop.permute.xlu0 %1258
      %1260 = vrot.lane.b32.xlu0 %v1253, 8
      %v1261 = vpop.permute.xlu0 %1260
      %vm1264 = vcmask 64512
      %v1265 = vsel %vm1264, %v1242, %v1259
      %v1266 = vsel %vm1264, %v1245, %v1261
      %v1267 = vpack.c.bf16 %v1266, %v1265
      %v1269 = vsel %vm935, %v1190, 0
      %1271 = vmatprep.subr.bf16.mxu0 0
      %1272 = vmatpush1.bf16.msra.mxu0 0
      %1273 = vmatprep.subr.bf16.mxu0 0
      %1274 = vmatpush1.bf16.msra.mxu0 0
      %1275 = vmatprep.subr.bf16.mxu0 0
      %1276 = vmatpush1.bf16.msra.mxu0 0
      %1277 = vmatprep.subr.bf16.mxu0 0
      %1278 = vmatpush1.bf16.msra.mxu0 0
      %1279 = vmatprep.subr.bf16.mxu0 0
      %1280 = vmatpush1.bf16.msra.mxu0 0
      %1281 = vmatprep.subr.bf16.mxu0 0
      %1282 = vmatpush1.bf16.msra.mxu0 0
      %1283 = vmatprep.subr.bf16.mxu0 0
      %1284 = vmatpush1.bf16.msra.mxu0 0
      %1285 = vmatprep.subr.bf16.mxu0 0
      %1286 = vmatpush1.bf16.msra.mxu0 %v1267
      %1287 = vmatprep.subr.bf16.mxu0 0
      %1288 = vmatpush2.bf16.msra.mxu0 0
      %1289 = vmatprep.subr.bf16.mxu0 0
      %1290 = vmatpush2.bf16.msra.mxu0 0
      %1291 = vmatprep.subr.bf16.mxu0 0
      %1292 = vmatpush2.bf16.msra.mxu0 0
      %1293 = vmatprep.subr.bf16.mxu0 0
      %1294 = vmatpush2.bf16.msra.mxu0 0
      %1295 = vmatprep.subr.bf16.mxu0 0
      %1296 = vmatpush2.bf16.msra.mxu0 0
      %1297 = vmatprep.subr.bf16.mxu0 0
      %1298 = vmatpush2.bf16.msra.mxu0 0
      %1299 = vmatprep.subr.bf16.mxu0 0
      %1300 = vmatpush2.bf16.msra.mxu0 0
      %1301 = vmatprep.subr.bf16.mxu0 0
      %1302 = vmatpush2.bf16.msra.mxu0 0
      %1303 = vmatprep.mubr.bf16.mxu0 0
      %1304 = vmatmul.mubr.bf16.gmra.mxu0 %v1269
      %v1305 = vpop.f32.mrf.mxu0
      %v1306 = vadd.f32 0.0, %v1305
      %v1307 = vpop.f32.mrf.mxu0
      %v1308 = vpop.f32.mrf.mxu0
      %v1309 = vpop.f32.mrf.mxu0
      %1310 = vdwg.mxu0
      %1312 = vrot.lane.b32.xlu0 %v1306, 120
      %v1313 = vpop.permute.xlu0 %1312
      %1315 = vrot.lane.b32.xlu0 %v1306, 126
      %v1316 = vpop.permute.xlu0 %1315
      %1317 = vrot.lane.b32.xlu0 %v1313, 126
      %v1318 = vpop.permute.xlu0 %1317
      %v1321 = vsub.f32 %v1306, %v1316
      %v1322 = vsub.f32 %v1313, %v1318
      %v1323 = vmul.f32 %v1321, 3.0
      %v1324 = vmul.f32 %v1322, 3.0
      %v1325 = vmul.f32 %v1321, 10.0
      %v1326 = vmul.f32 %v1322, 10.0
      %v1329 = vrot.slane %v1325, 1
      %v1330 = vrot.slane %v1326, 1
      %v1331 = vsel %vm504, %v1329, %v1330
      %v1334 = vadd.f32 %v1323, %v1331
      %v1335 = vadd.f32 %v1324, %v1330
      %v1338 = vrot.slane %v1323, 2
      %v1339 = vrot.slane %v1324, 2
      %v1340 = vsel %vm544, %v1338, %v1339
      %v1343 = vadd.f32 %v1334, %v1340
      %v1344 = vadd.f32 %v1335, %v1339
      %v1345 = vmul.f32 %v1306, 3.0
      %v1346 = vmul.f32 %v1313, 3.0
      %v1347 = vmul.f32 %v1306, 10.0
      %v1348 = vmul.f32 %v1313, 10.0
      %1351 = vrot.lane.b32.xlu0 %v1347, 127
      %v1352 = vpop.permute.xlu0 %1351
      %1353 = vrot.lane.b32.xlu0 %v1348, 127
      %v1354 = vpop.permute.xlu0 %1353
      %v1357 = vadd.f32 %v1345, %v1352
      %v1358 = vadd.f32 %v1346, %v1354
      %1361 = vrot.lane.b32.xlu0 %v1345, 126
      %v1362 = vpop.permute.xlu0 %1361
      %1363 = vrot.lane.b32.xlu0 %v1346, 126
      %v1364 = vpop.permute.xlu0 %1363
      %v1367 = vadd.f32 %v1357, %v1362
      %v1368 = vadd.f32 %v1358, %v1364
      %v1371 = vrot.slane %v1367, 2
      %v1372 = vrot.slane %v1368, 2
      %v1373 = vsel %vm544, %v1371, %v1372
      %v1376 = vsub.f32 %v1367, %v1373
      %v1377 = vsub.f32 %v1368, %v1372
      %v1378 = vmul.f32 %v1343, %v1343
      %v1379 = vmul.f32 %v1344, %v1344
      %v1380 = vmul.f32 %v1376, %v1376
      %v1381 = vmul.f32 %v1377, %v1377
      %v1382 = vadd.f32 %v1378, %v1380
      %v1383 = vadd.f32 %v1379, %v1381
      %v1384 = vrsqrt.pop %v1382
      %v1385 = vmul.f32 %v1382, %v1384
      %vm1386 = vcmp.eq.f32.partialorder %v1382, inf
      %v1387 = vsel %vm1386, %v1382, %v1385
      %vm1388 = vcmp.eq.f32.partialorder %v1382, 0.0
      %v1389 = vand.u32 %v1382, 2147483648
      %v1390 = vsel %vm1388, %v1389, %v1387
      %v1391 = vrsqrt.pop %v1383
      %v1392 = vmul.f32 %v1383, %v1391
      %vm1393 = vcmp.eq.f32.partialorder %v1383, inf
      %v1394 = vsel %vm1393, %v1383, %v1392
      %vm1395 = vcmp.eq.f32.partialorder %v1383, 0.0
      %v1396 = vand.u32 %v1383, 2147483648
      %v1397 = vsel %vm1395, %v1396, %v1394
      %v1398 = vsub.f32 %v1390, %v1397
      %v1399 = vand.u32 2147483647, %v1398
      %vm1400 = vcmask 46080
      %v1401 = vsel %vm1400, %v1399, 0.0
      %1402 = vadd.xlane.f32.xlu0 %v1401
      %v1403 = vpop.xlane.xlu0 %1402
      %v1404 = vrot.slane %v1403, 4
      %v1405 = vadd.f32 %v1403, %v1404
      %v1406 = vrot.slane %v1405, 2
      %v1407 = vadd.f32 %v1405, %v1406
      %v1408 = vrot.slane %v1407, 1
      %v1409 = vadd.f32 %v1407, %v1408
      %s1410 = vtos %v1409
      %v1411 = vstv %s1410
      %v1412 = vrcp.pop 36.0
      %v1413 = vmul.f32 %v1411, %v1412
      %v1414 = vadd.f32 %v1189, %v1413
      %v1415 = vld [vmem:[%s8] sm:$0x3]
      %v1416 = vld [vmem:[%s9] sm:$0xf]
      %v1417 = vpack.c.bf16 %v1313, %v1306
      %v1419 = vsel %vm1264, %v1417, 0
      %vm1421 = vcmask 1043456
      %v1423 = vsel %vm1421, %v1416, 0
      %1425 = vmatprep.subr.bf16.mxu0 0
      %1426 = vmatpush1.bf16.msra.mxu0 0
      %1427 = vmatprep.subr.bf16.mxu0 0
      %1428 = vmatpush1.bf16.msra.mxu0 0
      %1429 = vmatprep.subr.bf16.mxu0 0
      %1430 = vmatpush1.bf16.msra.mxu0 0
      %1431 = vmatprep.subr.bf16.mxu0 0
      %1432 = vmatpush1.bf16.msra.mxu0 0
      %1433 = vmatprep.subr.bf16.mxu0 0
      %1434 = vmatpush1.bf16.msra.mxu0 0
      %1435 = vmatprep.subr.bf16.mxu0 0
      %1436 = vmatpush1.bf16.msra.mxu0 0
      %1437 = vmatprep.subr.bf16.mxu0 0
      %1438 = vmatpush1.bf16.msra.mxu0 0
      %1439 = vmatprep.subr.bf16.mxu0 0
      %1440 = vmatpush1.bf16.msra.mxu0 %v1423
      %1441 = vmatprep.subr.bf16.mxu0 0
      %1442 = vmatpush2.bf16.msra.mxu0 0
      %1443 = vmatprep.subr.bf16.mxu0 0
      %1444 = vmatpush2.bf16.msra.mxu0 0
      %1445 = vmatprep.subr.bf16.mxu0 0
      %1446 = vmatpush2.bf16.msra.mxu0 0
      %1447 = vmatprep.subr.bf16.mxu0 0
      %1448 = vmatpush2.bf16.msra.mxu0 0
      %1449 = vmatprep.subr.bf16.mxu0 0
      %1450 = vmatpush2.bf16.msra.mxu0 0
      %1451 = vmatprep.subr.bf16.mxu0 0
      %1452 = vmatpush2.bf16.msra.mxu0 0
      %1453 = vmatprep.subr.bf16.mxu0 0
      %1454 = vmatpush2.bf16.msra.mxu0 0
      %1455 = vmatprep.subr.bf16.mxu0 0
      %1456 = vmatpush2.bf16.msra.mxu0 0
      %1457 = vmatprep.mubr.bf16.mxu0 0
      %1458 = vmatmul.mubr.bf16.gmra.mxu0 %v1419
      %v1459 = vpop.f32.mrf.mxu0
      %v1460 = vadd.f32 0.0, %v1459
      %v1461 = vpop.f32.mrf.mxu0
      %v1462 = vpop.f32.mrf.mxu0
      %v1463 = vadd.f32 0.0, %v1462
      %v1464 = vpop.f32.mrf.mxu0
      %1465 = vdwg.mxu0
      %1467 = vrot.lane.b32.xlu0 %v1463, 4
      %v1468 = vpop.permute.xlu0 %1467
      %vm1470 = vcmask 31744
      %v1471 = vsel %vm1470, %v1460, %v1468
      %v1472 = vpack.c.bf16 %v1471, %v1471
      %v1474 = vsel %vm1264, %v1415, 0
      %v1477 = vsel %vm1421, %v1472, 0
      %1479 = vmatprep.subr.bf16.mxu0 0
      %1480 = vmatpush1.bf16.msra.mxu0 0
      %1481 = vmatprep.subr.bf16.mxu0 0
      %1482 = vmatpush1.bf16.msra.mxu0 0
      %1483 = vmatprep.subr.bf16.mxu0 0
      %1484 = vmatpush1.bf16.msra.mxu0 0
      %1485 = vmatprep.subr.bf16.mxu0 0
      %1486 = vmatpush1.bf16.msra.mxu0 0
      %1487 = vmatprep.subr.bf16.mxu0 0
      %1488 = vmatpush1.bf16.msra.mxu0 0
      %1489 = vmatprep.subr.bf16.mxu0 0
      %1490 = vmatpush1.bf16.msra.mxu0 0
      %1491 = vmatprep.subr.bf16.mxu0 0
      %1492 = vmatpush1.bf16.msra.mxu0 0
      %1493 = vmatprep.subr.bf16.mxu0 0
      %1494 = vmatpush1.bf16.msra.mxu0 %v1477
      %1495 = vmatprep.subr.bf16.mxu0 0
      %1496 = vmatpush2.bf16.msra.mxu0 0
      %1497 = vmatprep.subr.bf16.mxu0 0
      %1498 = vmatpush2.bf16.msra.mxu0 0
      %1499 = vmatprep.subr.bf16.mxu0 0
      %1500 = vmatpush2.bf16.msra.mxu0 0
      %1501 = vmatprep.subr.bf16.mxu0 0
      %1502 = vmatpush2.bf16.msra.mxu0 0
      %1503 = vmatprep.subr.bf16.mxu0 0
      %1504 = vmatpush2.bf16.msra.mxu0 0
      %1505 = vmatprep.subr.bf16.mxu0 0
      %1506 = vmatpush2.bf16.msra.mxu0 0
      %1507 = vmatprep.subr.bf16.mxu0 0
      %1508 = vmatpush2.bf16.msra.mxu0 0
      %1509 = vmatprep.subr.bf16.mxu0 0
      %1510 = vmatpush2.bf16.msra.mxu0 0
      %1511 = vmatprep.mubr.bf16.mxu0 0
      %1512 = vmatmul.mubr.bf16.gmra.mxu0 %v1474
      %v1513 = vpop.f32.mrf.mxu0
      %v1514 = vadd.f32 0.0, %v1513
      %v1515 = vpop.f32.mrf.mxu0
      %v1516 = vpop.f32.mrf.mxu0
      %v1517 = vpop.f32.mrf.mxu0
      %1518 = vdwg.mxu0
      %v1520 = vrot.slane %v1514, 4
      %1521 = vrot.lane.b32.xlu0 %v1520, 124
      %v1522 = vpop.permute.xlu0 %1521
      %v1524 = vsel %vm1421, %v1514, %v1522
      %1526 = vrot.lane.b32.xlu0 %v1524, 126
      %v1527 = vpop.permute.xlu0 %1526
      %v1529 = vsub.f32 %v1524, %v1527
      %v1530 = vmul.f32 %v1529, 3.0
      %v1531 = vmul.f32 %v1529, 10.0
      %v1533 = vrot.slane %v1531, 1
      %v1535 = vadd.f32 %v1530, %v1533
      %v1537 = vrot.slane %v1530, 2
      %v1539 = vadd.f32 %v1535, %v1537
      %v1540 = vmul.f32 %v1524, 3.0
      %v1541 = vmul.f32 %v1524, 10.0
      %1543 = vrot.lane.b32.xlu0 %v1541, 127
      %v1544 = vpop.permute.xlu0 %1543
      %v1546 = vadd.f32 %v1540, %v1544
      %1548 = vrot.lane.b32.xlu0 %v1540, 126
      %v1549 = vpop.permute.xlu0 %1548
      %v1551 = vadd.f32 %v1546, %v1549
      %v1553 = vrot.slane %v1551, 2
      %v1555 = vsub.f32 %v1551, %v1553
      %v1556 = vmul.f32 %v1539, %v1539
      %v1557 = vmul.f32 %v1555, %v1555
      %v1558 = vadd.f32 %v1556, %v1557
      %v1559 = vrsqrt.pop %v1558
      %v1560 = vmul.f32 %v1558, %v1559
      %vm1561 = vcmp.eq.f32.partialorder %v1558, inf
      %v1562 = vsel %vm1561, %v1558, %v1560
      %vm1563 = vcmp.eq.f32.partialorder %v1558, 0.0
      %v1564 = vand.u32 %v1558, 2147483648
      %v1565 = vsel %vm1563, %v1564, %v1562
      %v1567 = vrot.slane %v1565, 4
      %v1569 = vsub.f32 %v1565, %v1567
      %v1570 = vand.u32 2147483647, %v1569
      %vm1571 = vcmask 9216
      %v1572 = vsel %vm1571, %v1570, 0.0
      %1573 = vadd.xlane.f32.xlu0 %v1572
      %v1574 = vpop.xlane.xlu0 %1573
      %v1575 = vrot.slane %v1574, 4
      %v1576 = vadd.f32 %v1574, %v1575
      %v1577 = vrot.slane %v1576, 2
      %v1578 = vadd.f32 %v1576, %v1577
      %v1579 = vrot.slane %v1578, 1
      %v1580 = vadd.f32 %v1578, %v1579
      %s1581 = vtos %v1580
      %v1582 = vstv %s1581
      %v1583 = vrcp.pop 4.0
      %v1584 = vmul.f32 %v1582, %v1583
      %v1585 = vadd.f32 %v1414, %v1584
      %v1586 = vmul.f32 %v1585, 0.25
      %v1587 = vmul.f32 %v1586, 0.5
      %v1588 = vadd.f32 %v439, %v1587
      %vm1589 = vcmask 0
      %1590 = vst.msk [vmem:[%s333] sm:$0x1] %vm1589, %v1588
      %p1591 = scmp.lt.s32.totalorder %s31, 1
      %s1592 = scalar_select %p1591, %s31, 1
      %s1593 = scalar_lea.vmem %s10, %s1592
      // Predicated region
      $region53: #{ssimae_loss.1} parent=51 // pred_check
        %p1594 = pneg %p227
      $region54: #{ssimae_loss.1} parent=51 // pred_check_branch
        %1596 = sbr.rel (%p1594) target = $region56
      $region55: #{ssimae_loss.1} parent=51 // pred_region
        _
      $region56: #{ssimae_loss.1} parent=51 // pred_fallthru
        _
    $region52: #{ssimae_loss.1} parent=5 // pred_fallthru
      _
    %p1597 = scmp.le.s32.totalorder 2, %s26
    // Predicated region
    $region57: #{ssimae_loss.1} parent=5 // pred_check
      %p1598 = pneg %p1597
    $region58: #{ssimae_loss.1} parent=5 // pred_check_branch
      %1600 = sbr.rel (%p1598) target = $region60
    $region59: #{ssimae_loss.1} parent=5 // pred_region
      %s1601 = ssub.s32 %s26, 2
      // Predicated region
      $region61: #{ssimae_loss.1} parent=59 // pred_check
        %p1602 = pneg %p233
      $region62: #{ssimae_loss.1} parent=59 // pred_check_branch
        %1604 = sbr.rel (%p1602) target = $region64
      $region63: #{ssimae_loss.1} parent=59 // pred_region
        %p1605 = scmp.lt.s32.totalorder %s32, 1
        %s1606 = scalar_select %p1605, %s32, 1
        %s1607 = scalar_lea.vmem %s10, %s1606
      $region64: #{ssimae_loss.1} parent=59 // pred_fallthru
        _
    $region60: #{ssimae_loss.1} parent=5 // pred_fallthru
      _
  $region6: #{ssimae_loss.1} parent=0 // loop_footer
    %s30 = sadd.s32 1, %s26
  $region7: #{ssimae_loss.1} parent=0 // loop_footer_branch
    %25 = sbr.rel target = $region3
  $region8: #{ssimae_loss.1} parent=0 // loop_exit
    _

</llo_original>
